<compile_context>
chip_gen: v5e
topology: v5e:2x2
jax: 0.10.0
libtpu: 0.0.40
codegen_flags: <defaults>
</compile_context>

<pallas_src>
import jax
import jax.numpy as jnp
from jax.experimental import pallas as pl
from jax.experimental.pallas import tpu as pltpu

_G = 32              # batch rows packed per lane-dense row: G*K = 2048 in-lanes, G*A = 128 out-lanes
_RT = 256            # packed-row tile = 8192 original rows (primary tuning knob; see wrapper comment)
_MIN_PALLAS_B = 1024  # below this, pallas_call launch/prologue dominates -> XLA fallback


def _decoder_kernel(x_ref, w_ref, b_ref, o_ref):
    # x_ref: (rt, G*K)  packed population activity, native dtype (no VPU upcast)
    # w_ref: (G*K, G*A) block-diagonal conv weight, replicated G times on the diagonal
    # b_ref: (1, G*A)   bias tiled G times (f32)
    # o_ref: (rt, G*A)  tanh output (f32), lane-dense
    s = jnp.dot(x_ref[...], w_ref[...], preferred_element_type=jnp.float32)   # MXU
    s = s + b_ref[...]                                                         # broadcast (1, G*A)
    o_ref[...] = jnp.tanh(s).astype(o_ref.dtype)                               # EUP


def pop_spike_decoder(pop_act, weight, bias, act_dim, pop_dim,
                      *, min_pallas_batch=_MIN_PALLAS_B):
    """
    pop_act : (..., act_dim * pop_dim) or (..., act_dim, pop_dim), float dtype
    weight  : (act_dim, pop_dim)   -- Conv1d weight with the in-channel dim squeezed
    bias    : (act_dim,)
    returns : (B, act_dim) float32 tanh-activated raw action
    """
    A, P = act_dim, pop_dim
    K = A * P

    x2d = jnp.reshape(pop_act, (-1, K))
    B = x2d.shape[0]

    # Block-diagonal weight: W_bd[a*P + p, a] = weight[a, p]; built once, f32.
    eye_a = jnp.eye(A, dtype=jnp.float32)
    w_bd = (weight.astype(jnp.float32)[:, :, None] * eye_a[:, None, :]).reshape(K, A)
    b2 = jnp.reshape(bias, (1, A)).astype(jnp.float32)

    # Small-batch fallback: a plain XLA fusion beats a standalone pallas_call here.
    if B < min_pallas_batch:
        return jnp.tanh(x2d.astype(jnp.float32) @ w_bd + b2)

    G = _G
    GK, GA = G * K, G * A

    # Keep bf16/f16 inputs narrow (MXU-native, halves HBM read + VMEM per buffer);
    # everything else computes in f32.
    if x2d.dtype == jnp.bfloat16 or x2d.dtype == jnp.float16:
        in_dtype = x2d.dtype
    else:
        in_dtype = jnp.float32
        x2d = x2d.astype(jnp.float32)

    # Lane-dense packing: pad B up to a multiple of G, then pack G consecutive batch
    # rows per packed row (row-major reshape => exact equivalence).
    Bp = ((B + G - 1) // G) * G
    if Bp != B:
        x2d = jnp.pad(x2d, ((0, Bp - B), (0, 0)))
    R = Bp // G
    x_packed = x2d.reshape(R, GK)
    w_big = jnp.kron(jnp.eye(G, dtype=jnp.float32), w_bd).astype(in_dtype)   # (GK, GA)
    b_big = jnp.tile(bias.astype(jnp.float32), (G,)).reshape(1, GA)          # (1, GA)

    # Packed-row tiling (primary tuning knob):
    #   rt=256 -> 8192 original rows/step, ~2 MiB/input buffer (f32): ~80-90% of HBM
    #   roofline on v5e/v6e within the default scoped VMEM (no vmem_limit needed).
    #   v7x: rt=512-1024 fits its 64 MiB VMEM (set vmem_limit_bytes if raising) and
    #   the grid must keep >=2 steps so both TensorCores stay busy.
    if R <= _RT:
        rt = R                                            # single full-extent block (always legal)
    else:
        rt = min(_RT, ((R + 1) // 2 + 7) // 8 * 8)        # >=2 balanced steps near the threshold
    grid = (pl.cdiv(R, rt),)

    itemsize = jnp.dtype(in_dtype).itemsize
    cost = pl.CostEstimate(
        flops=2 * R * GK * GA + Bp * A,
        transcendentals=Bp * A,
        bytes_accessed=Bp * K * itemsize + GK * GA * itemsize + GA * 4 + Bp * A * 4,
    )

    out_packed = pl.pallas_call(
        _decoder_kernel,
        out_shape=jax.ShapeDtypeStruct((R, GA), jnp.float32),
        grid_spec=pltpu.PrefetchScalarGridSpec(
            num_scalar_prefetch=0,
            grid=grid,
            in_specs=[
                pl.BlockSpec((rt, GK), lambda i: (i, 0)),   # streamed packed batch tiles
                pl.BlockSpec((GK, GA), lambda i: (0, 0)),   # resident weight
                pl.BlockSpec((1, GA), lambda i: (0, 0)),    # resident bias
            ],
            out_specs=pl.BlockSpec((rt, GA), lambda i: (i, 0)),
        ),
        compiler_params=pltpu.CompilerParams(
            dimension_semantics=("parallel",),
        ),
        cost_estimate=cost,
    )(x_packed, w_big, b_big)

    out = out_packed.reshape(Bp, A)                         # contiguous reshape, no HBM pass
    if Bp != B:
        out = out[:B]
    return out


if __name__ == "__main__":
    act_dim = 4
    pop_dim = 16

    key = jax.random.PRNGKey(0)
    k1, k2, k3, k4 = jax.random.split(key, 4)

    # Conv1d(act_dim, act_dim, pop_dim, groups=act_dim) weight: (A, 1, P) -> (A, P)
    weight = jax.random.normal(k1, (act_dim, pop_dim), dtype=jnp.float32) * 0.1
    bias = jax.random.normal(k2, (act_dim,), dtype=jnp.float32) * 0.1

    def ref_fn(x):
        x3 = x.reshape(-1, act_dim, pop_dim).astype(jnp.float32)
        return jnp.tanh(jnp.sum(x3 * weight[None], axis=-1) + bias[None])

    # Small batch (module's typical per-step use): exercises the XLA fallback path.
    small_x = jax.random.uniform(k3, (2, act_dim * pop_dim), dtype=jnp.float32)
    small_out = jax.block_until_ready(
        pop_spike_decoder(small_x, weight, bias, act_dim, pop_dim)
    )
    assert small_out.shape == (2, act_dim)
    assert jnp.allclose(small_out, ref_fn(small_x), atol=1e-5), "mismatch (fallback)"

    # Larger batch: exercises the Pallas kernel (lane-dense G=32 packing, batch padding
    # to a multiple of G, and a 2-step grid with a partial tail block).
    big_B = 8200
    big_x = jax.random.uniform(k4, (big_B, act_dim * pop_dim), dtype=jnp.float32)
    big_out = jax.block_until_ready(
        pop_spike_decoder(big_x, weight, bias, act_dim, pop_dim)
    )
    assert big_out.shape == (big_B, act_dim)
    assert jnp.allclose(big_out, ref_fn(big_x), atol=1e-5), "mismatch (pallas)"

    print("KERNEL_OK")
</pallas_src>

<mosaic_0001>
module attributes {stable_mosaic.version = 11 : i64} {
  func.func @_decoder_kernel(%arg0: i32, %arg1: memref<136x2048xf32, #tpu.memory_space<vmem>>, %arg2: memref<2048x128xf32, #tpu.memory_space<vmem>>, %arg3: memref<1x128xf32, #tpu.memory_space<vmem>>, %arg4: memref<136x128xf32, #tpu.memory_space<vmem>>) attributes {dimension_semantics = [#tpu.dimension_semantics<parallel>], iteration_bounds = array<i64: 2>, scalar_prefetch = 0 : i64, scratch_operands = 0 : i64, tpu.core_type = #tpu.core_type<tc>, window_params = [{transform_indices = @transform_0, window_bounds = array<i64: 136, 2048>}, {pipeline_mode = #tpu.pipeline_mode<synchronous>, transform_indices = @transform_1, window_bounds = array<i64: 2048, 128>}, {pipeline_mode = #tpu.pipeline_mode<synchronous>, transform_indices = @transform_2, window_bounds = array<i64: 1, 128>}, {transform_indices = @transform_3, window_bounds = array<i64: 136, 128>}]} {
    %c0 = arith.constant 0 : index
    %c0_0 = arith.constant 0 : index
    %0 = vector.load %arg1[%c0, %c0_0] : memref<136x2048xf32, #tpu.memory_space<vmem>>, vector<136x2048xf32>
    %c0_1 = arith.constant 0 : index
    %c0_2 = arith.constant 0 : index
    %1 = vector.load %arg2[%c0_1, %c0_2] : memref<2048x128xf32, #tpu.memory_space<vmem>>, vector<2048x128xf32>
    %cst = arith.constant dense<0.000000e+00> : vector<136x128xf32>
    %2 = tpu.matmul %0, %1, %cst {dimension_numbers = #tpu.dot_dimension_numbers<[1], [0], [0], [1], [0, 0, 1, 1], [], []>} : vector<136x2048xf32>, vector<2048x128xf32>, vector<136x128xf32> -> vector<136x128xf32>
    %c0_3 = arith.constant 0 : index
    %c0_4 = arith.constant 0 : index
    %3 = vector.load %arg3[%c0_3, %c0_4] : memref<1x128xf32, #tpu.memory_space<vmem>>, vector<1x128xf32>
    %4 = vector.broadcast %3 : vector<1x128xf32> to vector<136x128xf32>
    %5 = arith.addf %2, %4 : vector<136x128xf32>
    %6 = math.tanh %5 : vector<136x128xf32>
    %c0_5 = arith.constant 0 : index
    %c0_6 = arith.constant 0 : index
    %7 = vector.load %arg4[%c0_5, %c0_6] : memref<136x128xf32, #tpu.memory_space<vmem>>, vector<136x128xf32>
    tpu.vector_store %arg4[%c0_5, %c0_6], %6 {strides = array<i32>} : memref<136x128xf32, #tpu.memory_space<vmem>>, vector<136x128xf32>,
    return
  }
  func.func @transform_0(%arg0: i32) -> (i32, i32) {
    %c0_i32 = arith.constant 0 : i32
    %c0_i32_0 = arith.constant 0 : i32
    return %arg0, %c0_i32 : i32, i32
  }
  func.func @transform_1(%arg0: i32) -> (i32, i32) {
    %c0_i32 = arith.constant 0 : i32
    %c0_i32_0 = arith.constant 0 : i32
    %c0_i32_1 = arith.constant 0 : i32
    return %c0_i32, %c0_i32_0 : i32, i32
  }
  func.func @transform_2(%arg0: i32) -> (i32, i32) {
    %c0_i32 = arith.constant 0 : i32
    %c0_i32_0 = arith.constant 0 : i32
    %c0_i32_1 = arith.constant 0 : i32
    return %c0_i32, %c0_i32_0 : i32, i32
  }
  func.func @transform_3(%arg0: i32) -> (i32, i32) {
    %c0_i32 = arith.constant 0 : i32
    %c0_i32_0 = arith.constant 0 : i32
    return %arg0, %c0_i32 : i32, i32
  }
}

</mosaic_0001>

<llo_original>
// kernel: tpu_custom_call.1
$region0: #{tpu_custom_call.1}
  #allocation0 [shape = 'u32[]', space=smem, size = 0x4, offset = 0x4, fixed_abs, tag = 'smem constant byte address 0x4 - core index']
  #allocation1 [shape = 'u32[72,128]{1,0:T(1,128)}', space=vmem, size = 0x9000, scoped, tag = 'internal scratch']
  %s0 = inlined_call_operand.hbm [shape: f32[257,2048], index: 0, kind: input, shape index: {}]
  %s1 = inlined_call_operand.hbm [shape: f32[2048,128], index: 1, kind: input, shape index: {}]
  %s2 = inlined_call_operand.hbm [shape: f32[1,128], index: 2, kind: input, shape index: {}]
  %s3 = inlined_call_operand.hbm [shape: f32[257,128], index: 3, kind: output, shape index: {}]
  %s4 = sld [smem:[#allocation0]]
  $region57: #{tpu_custom_call.1} parent=0
    _
  %s6 = ssub.s32 1, %s4
  %s7 = scalar_select 0, %s6, %s4
  $region1: #{tpu_custom_call.1} parent=0
    #allocation2 [shape = 'u8[2228224]{0}', space=vmem, size = 0x220000, scoped, tag = 'input window, operand 0']
    #allocation3 [shape = 's32[2]{0}', space=sflag, size = 0x8, scoped, tag = 'scoped memory for tpu_custom_call.1']
    #allocation4 [shape = 's32[2]{0}', space=sflag, size = 0x8, scoped, tag = 'scoped memory for tpu_custom_call.1']
    #allocation5 [shape = 'u8[1048576]{0}', space=vmem, size = 0x100000, scoped, tag = 'input window, operand 1, single buffered']
    #allocation6 [shape = 's32[1]{0}', space=sflag, size = 0x4, scoped, tag = 'scoped memory for tpu_custom_call.1']
    #allocation7 [shape = 'u8[512]{0}', space=vmem, size = 0x400, scoped, tag = 'input window, operand 2, single buffered']
    #allocation8 [shape = 'u8[139264]{0}', space=vmem, size = 0x22000, scoped, tag = 'output window, operand 0']
    %8 = vsyncpa [#allocation3], 0
    %s9 = scalar_lea.sflag [#allocation3], 1
    %10 = vsyncpa %s9, 0
    %11 = vsyncpa [#allocation6], 0
    %12 = vsyncpa [#allocation4], 0
    %s13 = scalar_lea.sflag [#allocation4], 1
    %14 = vsyncpa %s13, 0
    loop: start=0, step=1, limit=4
    $region2: #{tpu_custom_call.1} parent=1 // loop_pre_header
      _
    $region3: #{tpu_custom_call.1} parent=1 // loop_header
      %s16 = sphi 0, %s20
      %p17 = scmp.ge.s32.totalorder %s16, 4
      %s26 = sphi 0, %s28
      %s29 = sphi 0, %s26
      %s30 = sphi 0, %s29
      %s46 = sphi 0, %s30
      %s50 = sphi 0, %s50
      %s52 = sphi 0, %s50
      %s53 = sphi 0, %s52
      %s67 = sphi 0, %s53
      %s71 = sphi 0, %s71
      %s73 = sphi 0, %s71
      %s74 = sphi 0, %s73
      %s88 = sphi 0, %s74
      %s94 = sphi 0, %s96
      %s97 = sphi 0, %s94
      %s98 = sphi 0, %s97
      %s114 = sphi 0, %s98
    $region4: #{tpu_custom_call.1} parent=1 // loop_header_branch
      %19 = sbr.rel (%p17) target = $region8
    $region5: #{tpu_custom_call.1} parent=1 // loop_body
      %s21 = ssub.s32 %s16, 1
      %s22 = ssub.s32 %s16, 2
      %s23 = sadd.s32 %s16, 1
      %s24 = ssub.s32 %s16, %s23
      %p25 = scmp.eq.s32.totalorder %s24, 0
      %s27 = sadd.s32 %s26, 1
      %s28 = scalar_select %p25, %s26, %s27
      %p31 = pneg %p25
      %p32 = scmp.eq.s32.totalorder %s16, 1
      %p33 = por %p31, %p32
      %p34 = scmp.ne.s32.totalorder %s26, %s29
      %p35 = scmp.eq.s32.totalorder %s16, 0
      %p36 = por %p34, %p35
      %p37 = scmp.ne.s32.totalorder %s26, %s29
      %p38 = scmp.eq.s32.totalorder %s21, 1
      %p39 = por %p37, %p38
      %p40 = scmp.ne.s32.totalorder %s29, %s30
      %p41 = scmp.eq.s32.totalorder %s21, 0
      %p42 = por %p40, %p41
      %p43 = scmp.ne.s32.totalorder %s29, %s30
      %p44 = scmp.eq.s32.totalorder %s22, 1
      %p45 = por %p43, %p44
      %p47 = scmp.ne.s32.totalorder %s30, %s46
      %p48 = scmp.eq.s32.totalorder %s22, 0
      %p49 = por %p47, %p48
      %s51 = sadd.s32 %s50, 1
      %p54 = scmp.eq.s32.totalorder %s16, 1
      %p55 = scmp.ne.s32.totalorder %s50, %s52
      %p56 = scmp.eq.s32.totalorder %s16, 0
      %p57 = por %p55, %p56
      %p58 = scmp.ne.s32.totalorder %s50, %s52
      %p59 = scmp.eq.s32.totalorder %s21, 1
      %p60 = por %p58, %p59
      %p61 = scmp.ne.s32.totalorder %s52, %s53
      %p62 = scmp.eq.s32.totalorder %s21, 0
      %p63 = por %p61, %p62
      %p64 = scmp.ne.s32.totalorder %s52, %s53
      %p65 = scmp.eq.s32.totalorder %s22, 1
      %p66 = por %p64, %p65
      %p68 = scmp.ne.s32.totalorder %s53, %s67
      %p69 = scmp.eq.s32.totalorder %s22, 0
      %p70 = por %p68, %p69
      %s72 = sadd.s32 %s71, 1
      %p75 = scmp.eq.s32.totalorder %s16, 1
      %p76 = scmp.ne.s32.totalorder %s71, %s73
      %p77 = scmp.eq.s32.totalorder %s16, 0
      %p78 = por %p76, %p77
      %p79 = scmp.ne.s32.totalorder %s71, %s73
      %p80 = scmp.eq.s32.totalorder %s21, 1
      %p81 = por %p79, %p80
      %p82 = scmp.ne.s32.totalorder %s73, %s74
      %p83 = scmp.eq.s32.totalorder %s21, 0
      %p84 = por %p82, %p83
      %p85 = scmp.ne.s32.totalorder %s73, %s74
      %p86 = scmp.eq.s32.totalorder %s22, 1
      %p87 = por %p85, %p86
      %p89 = scmp.ne.s32.totalorder %s74, %s88
      %p90 = scmp.eq.s32.totalorder %s22, 0
      %p91 = por %p89, %p90
      %s92 = ssub.s32 %s16, %s23
      %p93 = scmp.eq.s32.totalorder %s92, 0
      %s95 = sadd.s32 %s94, 1
      %s96 = scalar_select %p93, %s94, %s95
      %p99 = pneg %p93
      %p100 = scmp.eq.s32.totalorder %s16, 1
      %p101 = por %p99, %p100
      %p102 = scmp.ne.s32.totalorder %s94, %s97
      %p103 = scmp.eq.s32.totalorder %s16, 0
      %p104 = por %p102, %p103
      %p105 = scmp.ne.s32.totalorder %s94, %s97
      %p106 = scmp.eq.s32.totalorder %s21, 1
      %p107 = por %p105, %p106
      %p108 = scmp.ne.s32.totalorder %s97, %s98
      %p109 = scmp.eq.s32.totalorder %s21, 0
      %p110 = por %p108, %p109
      %p111 = scmp.ne.s32.totalorder %s97, %s98
      %p112 = scmp.eq.s32.totalorder %s22, 1
      %p113 = por %p111, %p112
      %p115 = scmp.ne.s32.totalorder %s98, %s114
      %p116 = scmp.eq.s32.totalorder %s22, 0
      %p117 = por %p115, %p116
      %p118 = scmp.le.s32.totalorder 1, %s16
      %p119 = scmp.lt.s32.totalorder %s16, 3
      %p120 = pnand %p118, %p119
      %p121 = pneg %p120
      // Predicated region
      $region9: #{tpu_custom_call.1} parent=5 // pred_check
        _
      $region10: #{tpu_custom_call.1} parent=5 // pred_check_branch
        %123 = sbr.rel (%p120) target = $region12
      $region11: #{tpu_custom_call.1} parent=5 // pred_region
        %s124 = ssub.s32 %s16, 1
        // Predicated region
        $region13: #{tpu_custom_call.1} parent=11 // pred_check
          %p125 = pneg %p63
        $region14: #{tpu_custom_call.1} parent=11 // pred_check_branch
          %127 = sbr.rel (%p125) target = $region16
        $region15: #{tpu_custom_call.1} parent=11 // pred_region
          %129 = vsyncadd [#allocation6], 0
          %s130 = sshll.u32 %s1, 4
          %s131 = int_to_ptr.hbm [resolvable:$true] %s130
          %s132 = sshll.u32 [#allocation5], 4
          %s133 = int_to_ptr.vmem [resolvable:$true] %s132
          %138 = dma.hbm_to_vmem [thread:$0]  %s131, 32768, %s133, [#allocation6], 128, 128, 8
        $region16: #{tpu_custom_call.1} parent=11 // pred_fallthru
          _
        // Predicated region
        $region17: #{tpu_custom_call.1} parent=11 // pred_check
          %p139 = pneg %p84
        $region18: #{tpu_custom_call.1} parent=11 // pred_check_branch
          %141 = sbr.rel (%p139) target = $region20
        $region19: #{tpu_custom_call.1} parent=11 // pred_region
          %143 = vsyncadd [#allocation6], 0
          %s145 = sshll.u32 %s2, 4
          %s146 = int_to_ptr.hbm [resolvable:$true] %s145
          %s147 = sshll.u32 [#allocation7], 4
          %s148 = int_to_ptr.vmem [resolvable:$true] %s147
          %150 = dma.hbm_to_vmem [thread:$0]  %s146, 16, %s148, [#allocation6]
        $region20: #{tpu_custom_call.1} parent=11 // pred_fallthru
          _
      $region12: #{tpu_custom_call.1} parent=5 // pred_fallthru
        _
      %p151 = scmp.lt.s32.totalorder %s16, 2
      // Predicated region
      $region21: #{tpu_custom_call.1} parent=5 // pred_check
        %p152 = pneg %p151
      $region22: #{tpu_custom_call.1} parent=5 // pred_check_branch
        %154 = sbr.rel (%p152) target = $region24
      $region23: #{tpu_custom_call.1} parent=5 // pred_region
        // Predicated region
        $region25: #{tpu_custom_call.1} parent=23 // pred_check
          %p155 = pneg %p36
        $region26: #{tpu_custom_call.1} parent=23 // pred_check_branch
          %157 = sbr.rel (%p155) target = $region28
        $region27: #{tpu_custom_call.1} parent=23 // pred_region
          %s158 = sand.u32 %s26, 1
          %s159 = scalar_lea.sflag [#allocation3], %s158
          %s160 = sand.u32 %s26, 1
          %s161 = smul.addr %s160, 2176
          %s162 = scalar_lea.vmem [#allocation2], %s161
          %s163 = smul.u32 17, %s16
          %s164 = ssub.s32 33, %s163
          %p165 = scmp.lt.s32.totalorder %s164, 17
          %s166 = scalar_select %p165, %s164, 17
          %s167 = smul.u32 8, %s166
          %s168 = smul.u32 %s167, 16
          %s169 = ssub.s32 2176, %s168
          %s170 = sshll.u32 %s169, 4
          %171 = vsyncadd %s159, %s170
          %p172 = scmp.ne.s32.totalorder 0, %s168
          %s173 = smul.addr %s163, 16
          %s174 = smul.addr %s173, 8
          %s175 = scalar_lea.hbm %s0, %s174
          %s176 = smul.u32 128, %s166
          %s177 = sshll.u32 %s175, 4
          %s178 = int_to_ptr.hbm [resolvable:$true] %s177
          %s179 = sshll.u32 %s162, 4
          %s180 = int_to_ptr.vmem [resolvable:$true] %s179
          %s181 = sshll.u32 %s176, 4
          %185 = dma.hbm_to_vmem [thread:$0]  (%p172), %s178, %s181, %s180, %s159, 2048, 2048, 128
        $region28: #{tpu_custom_call.1} parent=23 // pred_fallthru
          _
      $region24: #{tpu_custom_call.1} parent=5 // pred_fallthru
        _
      %p186 = scmp.le.s32.totalorder 1, %s16
      %p187 = scmp.lt.s32.totalorder %s16, 3
      %p188 = pnand %p186, %p187
      %p189 = pneg %p188
      // Predicated region
      $region29: #{tpu_custom_call.1} parent=5 // pred_check
        _
      $region30: #{tpu_custom_call.1} parent=5 // pred_check_branch
        %191 = sbr.rel (%p188) target = $region32
      $region31: #{tpu_custom_call.1} parent=5 // pred_region
        %s192 = ssub.s32 %s16, 1
        %s193 = sand.u32 %s29, 1
        %s194 = scalar_lea.sflag [#allocation3], %s193
        %s195 = sand.u32 %s29, 1
        %s196 = smul.addr %s195, 2176
        %s197 = scalar_lea.vmem [#allocation2], %s196
        // Predicated region
        $region33: #{tpu_custom_call.1} parent=31 // pred_check
          %p198 = pneg %p42
        $region34: #{tpu_custom_call.1} parent=31 // pred_check_branch
          %200 = sbr.rel (%p198) target = $region36
        $region35: #{tpu_custom_call.1} parent=31 // pred_region
          %202 = dma.done %s194, 34816
        $region36: #{tpu_custom_call.1} parent=31 // pred_fallthru
          _
        // Predicated region
        $region37: #{tpu_custom_call.1} parent=31 // pred_check
          %p203 = pneg %p63
        $region38: #{tpu_custom_call.1} parent=31 // pred_check_branch
          %205 = sbr.rel (%p203) target = $region40
        $region39: #{tpu_custom_call.1} parent=31 // pred_region
          %207 = dma.done [#allocation6], 32768
        $region40: #{tpu_custom_call.1} parent=31 // pred_fallthru
          _
        // Predicated region
        $region41: #{tpu_custom_call.1} parent=31 // pred_check
          %p208 = pneg %p84
        $region42: #{tpu_custom_call.1} parent=31 // pred_check_branch
          %210 = sbr.rel (%p208) target = $region44
        $region43: #{tpu_custom_call.1} parent=31 // pred_region
          %212 = dma.done [#allocation6], 16
        $region44: #{tpu_custom_call.1} parent=31 // pred_fallthru
          _
        %s213 = sand.u32 %s29, 1
        %s214 = scalar_lea.sflag [#allocation3], %s213
        %s215 = sand.u32 %s29, 1
        %s216 = smul.addr %s215, 2176
        %s217 = scalar_lea.vmem [#allocation2], %s216
        %p218 = pneg %p42
        %p219 = pneg %p39
        %p220 = pneg %p63
        %p221 = pneg %p60
        %p222 = pneg %p84
        %p223 = pneg %p81
        %p224 = pneg %p110
        %p225 = pneg %p107
        %s226 = sand.u32 %s97, 1
        %s227 = scalar_lea.sflag [#allocation4], %s226
        %s228 = sand.u32 %s97, 1
        %s229 = smul.addr %s228, 136
        %s230 = scalar_lea.vmem [#allocation8], %s229
        %s231 = smul.u32 17, %s21
        %s232 = ssub.s32 33, %s231
        %p233 = scmp.lt.s32.totalorder %s232, 17
        %s234 = scalar_select %p233, %s232, 17
        %s235 = smul.u32 8, %s234
        %s236 = smul.u32 %s235, 16
        %s237 = smul.u32 17, %s21
        %s238 = ssub.s32 33, %s237
        %p239 = scmp.lt.s32.totalorder %s238, 17
        %s240 = scalar_select %p239, %s238, 17
        %s241 = smul.u32 8, %s240
        %v242 = vld [vmem:[%s197] sm:$0xff]
        %v243 = vld [vmem:[%s197 + $0x8] sm:$0xff]
        %v244 = vld [vmem:[%s197 + $0x10] sm:$0xff]
        %v245 = vld [vmem:[%s197 + $0x18] sm:$0xff]
        %v246 = vld [vmem:[%s197 + $0x20] sm:$0xff]
        %v247 = vld [vmem:[%s197 + $0x28] sm:$0xff]
        %v248 = vld [vmem:[%s197 + $0x30] sm:$0xff]
        %v249 = vld [vmem:[%s197 + $0x38] sm:$0xff]
        %v250 = vld [vmem:[%s197 + $0x40] sm:$0xff]
        %v251 = vld [vmem:[%s197 + $0x48] sm:$0xff]
        %v252 = vld [vmem:[%s197 + $0x50] sm:$0xff]
        %v253 = vld [vmem:[%s197 + $0x58] sm:$0xff]
        %v254 = vld [vmem:[%s197 + $0x60] sm:$0xff]
        %v255 = vld [vmem:[%s197 + $0x68] sm:$0xff]
        %v256 = vld [vmem:[%s197 + $0x70] sm:$0xff]
        %v257 = vld [vmem:[%s197 + $0x78] sm:$0xff]
        %v258 = vld [vmem:[%s197 + $0x80] sm:$0xff]
        %v259 = vld [vmem:[%s197 + $0x88] sm:$0xff]
        %v260 = vld [vmem:[%s197 + $0x90] sm:$0xff]
        %v261 = vld [vmem:[%s197 + $0x98] sm:$0xff]
        %v262 = vld [vmem:[%s197 + $0xa0] sm:$0xff]
        %v263 = vld [vmem:[%s197 + $0xa8] sm:$0xff]
        %v264 = vld [vmem:[%s197 + $0xb0] sm:$0xff]
        %v265 = vld [vmem:[%s197 + $0xb8] sm:$0xff]
        %v266 = vld [vmem:[%s197 + $0xc0] sm:$0xff]
        %v267 = vld [vmem:[%s197 + $0xc8] sm:$0xff]
        %v268 = vld [vmem:[%s197 + $0xd0] sm:$0xff]
        %v269 = vld [vmem:[%s197 + $0xd8] sm:$0xff]
        %v270 = vld [vmem:[%s197 + $0xe0] sm:$0xff]
        %v271 = vld [vmem:[%s197 + $0xe8] sm:$0xff]
        %v272 = vld [vmem:[%s197 + $0xf0] sm:$0xff]
        %v273 = vld [vmem:[%s197 + $0xf8] sm:$0xff]
        %v274 = vld [vmem:[%s197 + $0x100] sm:$0xff]
        %v275 = vld [vmem:[%s197 + $0x108] sm:$0xff]
        %v276 = vld [vmem:[%s197 + $0x110] sm:$0xff]
        %v277 = vld [vmem:[%s197 + $0x118] sm:$0xff]
        %v278 = vld [vmem:[%s197 + $0x120] sm:$0xff]
        %v279 = vld [vmem:[%s197 + $0x128] sm:$0xff]
        %v280 = vld [vmem:[%s197 + $0x130] sm:$0xff]
        %v281 = vld [vmem:[%s197 + $0x138] sm:$0xff]
        %v282 = vld [vmem:[%s197 + $0x140] sm:$0xff]
        %v283 = vld [vmem:[%s197 + $0x148] sm:$0xff]
        %v284 = vld [vmem:[%s197 + $0x150] sm:$0xff]
        %v285 = vld [vmem:[%s197 + $0x158] sm:$0xff]
        %v286 = vld [vmem:[%s197 + $0x160] sm:$0xff]
        %v287 = vld [vmem:[%s197 + $0x168] sm:$0xff]
        %v288 = vld [vmem:[%s197 + $0x170] sm:$0xff]
        %v289 = vld [vmem:[%s197 + $0x178] sm:$0xff]
        %v290 = vld [vmem:[%s197 + $0x180] sm:$0xff]
        %v291 = vld [vmem:[%s197 + $0x188] sm:$0xff]
        %v292 = vld [vmem:[%s197 + $0x190] sm:$0xff]
        %v293 = vld [vmem:[%s197 + $0x198] sm:$0xff]
        %v294 = vld [vmem:[%s197 + $0x1a0] sm:$0xff]
        %v295 = vld [vmem:[%s197 + $0x1a8] sm:$0xff]
        %v296 = vld [vmem:[%s197 + $0x1b0] sm:$0xff]
        %v297 = vld [vmem:[%s197 + $0x1b8] sm:$0xff]
        %v298 = vld [vmem:[%s197 + $0x1c0] sm:$0xff]
        %v299 = vld [vmem:[%s197 + $0x1c8] sm:$0xff]
        %v300 = vld [vmem:[%s197 + $0x1d0] sm:$0xff]
        %v301 = vld [vmem:[%s197 + $0x1d8] sm:$0xff]
        %v302 = vld [vmem:[%s197 + $0x1e0] sm:$0xff]
        %v303 = vld [vmem:[%s197 + $0x1e8] sm:$0xff]
        %v304 = vld [vmem:[%s197 + $0x1f0] sm:$0xff]
        %v305 = vld [vmem:[%s197 + $0x1f8] sm:$0xff]
        %v306 = vld [vmem:[%s197 + $0x200] sm:$0xff]
        %v307 = vld [vmem:[%s197 + $0x208] sm:$0xff]
        %v308 = vld [vmem:[%s197 + $0x210] sm:$0xff]
        %v309 = vld [vmem:[%s197 + $0x218] sm:$0xff]
        %v310 = vld [vmem:[%s197 + $0x220] sm:$0xff]
        %v311 = vld [vmem:[%s197 + $0x228] sm:$0xff]
        %v312 = vld [vmem:[%s197 + $0x230] sm:$0xff]
        %v313 = vld [vmem:[%s197 + $0x238] sm:$0xff]
        %v314 = vld [vmem:[%s197 + $0x240] sm:$0xff]
        %v315 = vld [vmem:[%s197 + $0x248] sm:$0xff]
        %v316 = vld [vmem:[%s197 + $0x250] sm:$0xff]
        %v317 = vld [vmem:[%s197 + $0x258] sm:$0xff]
        %v318 = vld [vmem:[%s197 + $0x260] sm:$0xff]
        %v319 = vld [vmem:[%s197 + $0x268] sm:$0xff]
        %v320 = vld [vmem:[%s197 + $0x270] sm:$0xff]
        %v321 = vld [vmem:[%s197 + $0x278] sm:$0xff]
        %v322 = vld [vmem:[%s197 + $0x280] sm:$0xff]
        %v323 = vld [vmem:[%s197 + $0x288] sm:$0xff]
        %v324 = vld [vmem:[%s197 + $0x290] sm:$0xff]
        %v325 = vld [vmem:[%s197 + $0x298] sm:$0xff]
        %v326 = vld [vmem:[%s197 + $0x2a0] sm:$0xff]
        %v327 = vld [vmem:[%s197 + $0x2a8] sm:$0xff]
        %v328 = vld [vmem:[%s197 + $0x2b0] sm:$0xff]
        %v329 = vld [vmem:[%s197 + $0x2b8] sm:$0xff]
        %v330 = vld [vmem:[%s197 + $0x2c0] sm:$0xff]
        %v331 = vld [vmem:[%s197 + $0x2c8] sm:$0xff]
        %v332 = vld [vmem:[%s197 + $0x2d0] sm:$0xff]
        %v333 = vld [vmem:[%s197 + $0x2d8] sm:$0xff]
        %v334 = vld [vmem:[%s197 + $0x2e0] sm:$0xff]
        %v335 = vld [vmem:[%s197 + $0x2e8] sm:$0xff]
        %v336 = vld [vmem:[%s197 + $0x2f0] sm:$0xff]
        %v337 = vld [vmem:[%s197 + $0x2f8] sm:$0xff]
        %v338 = vld [vmem:[%s197 + $0x300] sm:$0xff]
        %v339 = vld [vmem:[%s197 + $0x308] sm:$0xff]
        %v340 = vld [vmem:[%s197 + $0x310] sm:$0xff]
        %v341 = vld [vmem:[%s197 + $0x318] sm:$0xff]
        %v342 = vld [vmem:[%s197 + $0x320] sm:$0xff]
        %v343 = vld [vmem:[%s197 + $0x328] sm:$0xff]
        %v344 = vld [vmem:[%s197 + $0x330] sm:$0xff]
        %v345 = vld [vmem:[%s197 + $0x338] sm:$0xff]
        %v346 = vld [vmem:[%s197 + $0x340] sm:$0xff]
        %v347 = vld [vmem:[%s197 + $0x348] sm:$0xff]
        %v348 = vld [vmem:[%s197 + $0x350] sm:$0xff]
        %v349 = vld [vmem:[%s197 + $0x358] sm:$0xff]
        %v350 = vld [vmem:[%s197 + $0x360] sm:$0xff]
        %v351 = vld [vmem:[%s197 + $0x368] sm:$0xff]
        %v352 = vld [vmem:[%s197 + $0x370] sm:$0xff]
        %v353 = vld [vmem:[%s197 + $0x378] sm:$0xff]
        %v354 = vld [vmem:[%s197 + $0x380] sm:$0xff]
        %v355 = vld [vmem:[%s197 + $0x388] sm:$0xff]
        %v356 = vld [vmem:[%s197 + $0x390] sm:$0xff]
        %v357 = vld [vmem:[%s197 + $0x398] sm:$0xff]
        %v358 = vld [vmem:[%s197 + $0x3a0] sm:$0xff]
        %v359 = vld [vmem:[%s197 + $0x3a8] sm:$0xff]
        %v360 = vld [vmem:[%s197 + $0x3b0] sm:$0xff]
        %v361 = vld [vmem:[%s197 + $0x3b8] sm:$0xff]
        %v362 = vld [vmem:[%s197 + $0x3c0] sm:$0xff]
        %v363 = vld [vmem:[%s197 + $0x3c8] sm:$0xff]
        %v364 = vld [vmem:[%s197 + $0x3d0] sm:$0xff]
        %v365 = vld [vmem:[%s197 + $0x3d8] sm:$0xff]
        %v366 = vld [vmem:[%s197 + $0x3e0] sm:$0xff]
        %v367 = vld [vmem:[%s197 + $0x3e8] sm:$0xff]
        %v368 = vld [vmem:[%s197 + $0x3f0] sm:$0xff]
        %v369 = vld [vmem:[%s197 + $0x3f8] sm:$0xff]
        %v370 = vld [vmem:[%s197 + $0x400] sm:$0xff]
        %v371 = vld [vmem:[%s197 + $0x408] sm:$0xff]
        %v372 = vld [vmem:[%s197 + $0x410] sm:$0xff]
        %v373 = vld [vmem:[%s197 + $0x418] sm:$0xff]
        %v374 = vld [vmem:[%s197 + $0x420] sm:$0xff]
        %v375 = vld [vmem:[%s197 + $0x428] sm:$0xff]
        %v376 = vld [vmem:[%s197 + $0x430] sm:$0xff]
        %v377 = vld [vmem:[%s197 + $0x438] sm:$0xff]
        %v378 = vld [vmem:[%s197 + $0x440] sm:$0xff]
        %v379 = vld [vmem:[%s197 + $0x448] sm:$0xff]
        %v380 = vld [vmem:[%s197 + $0x450] sm:$0xff]
        %v381 = vld [vmem:[%s197 + $0x458] sm:$0xff]
        %v382 = vld [vmem:[%s197 + $0x460] sm:$0xff]
        %v383 = vld [vmem:[%s197 + $0x468] sm:$0xff]
        %v384 = vld [vmem:[%s197 + $0x470] sm:$0xff]
        %v385 = vld [vmem:[%s197 + $0x478] sm:$0xff]
        %v386 = vld [vmem:[%s197 + $0x480] sm:$0xff]
        %v387 = vld [vmem:[%s197 + $0x488] sm:$0xff]
        %v388 = vld [vmem:[%s197 + $0x490] sm:$0xff]
        %v389 = vld [vmem:[%s197 + $0x498] sm:$0xff]
        %v390 = vld [vmem:[%s197 + $0x4a0] sm:$0xff]
        %v391 = vld [vmem:[%s197 + $0x4a8] sm:$0xff]
        %v392 = vld [vmem:[%s197 + $0x4b0] sm:$0xff]
        %v393 = vld [vmem:[%s197 + $0x4b8] sm:$0xff]
        %v394 = vld [vmem:[%s197 + $0x4c0] sm:$0xff]
        %v395 = vld [vmem:[%s197 + $0x4c8] sm:$0xff]
        %v396 = vld [vmem:[%s197 + $0x4d0] sm:$0xff]
        %v397 = vld [vmem:[%s197 + $0x4d8] sm:$0xff]
        %v398 = vld [vmem:[%s197 + $0x4e0] sm:$0xff]
        %v399 = vld [vmem:[%s197 + $0x4e8] sm:$0xff]
        %v400 = vld [vmem:[%s197 + $0x4f0] sm:$0xff]
        %v401 = vld [vmem:[%s197 + $0x4f8] sm:$0xff]
        %v402 = vld [vmem:[%s197 + $0x500] sm:$0xff]
        %v403 = vld [vmem:[%s197 + $0x508] sm:$0xff]
        %v404 = vld [vmem:[%s197 + $0x510] sm:$0xff]
        %v405 = vld [vmem:[%s197 + $0x518] sm:$0xff]
        %v406 = vld [vmem:[%s197 + $0x520] sm:$0xff]
        %v407 = vld [vmem:[%s197 + $0x528] sm:$0xff]
        %v408 = vld [vmem:[%s197 + $0x530] sm:$0xff]
        %v409 = vld [vmem:[%s197 + $0x538] sm:$0xff]
        %v410 = vld [vmem:[%s197 + $0x540] sm:$0xff]
        %v411 = vld [vmem:[%s197 + $0x548] sm:$0xff]
        %v412 = vld [vmem:[%s197 + $0x550] sm:$0xff]
        %v413 = vld [vmem:[%s197 + $0x558] sm:$0xff]
        %v414 = vld [vmem:[%s197 + $0x560] sm:$0xff]
        %v415 = vld [vmem:[%s197 + $0x568] sm:$0xff]
        %v416 = vld [vmem:[%s197 + $0x570] sm:$0xff]
        %v417 = vld [vmem:[%s197 + $0x578] sm:$0xff]
        %v418 = vld [vmem:[%s197 + $0x580] sm:$0xff]
        %v419 = vld [vmem:[%s197 + $0x588] sm:$0xff]
        %v420 = vld [vmem:[%s197 + $0x590] sm:$0xff]
        %v421 = vld [vmem:[%s197 + $0x598] sm:$0xff]
        %v422 = vld [vmem:[%s197 + $0x5a0] sm:$0xff]
        %v423 = vld [vmem:[%s197 + $0x5a8] sm:$0xff]
        %v424 = vld [vmem:[%s197 + $0x5b0] sm:$0xff]
        %v425 = vld [vmem:[%s197 + $0x5b8] sm:$0xff]
        %v426 = vld [vmem:[%s197 + $0x5c0] sm:$0xff]
        %v427 = vld [vmem:[%s197 + $0x5c8] sm:$0xff]
        %v428 = vld [vmem:[%s197 + $0x5d0] sm:$0xff]
        %v429 = vld [vmem:[%s197 + $0x5d8] sm:$0xff]
        %v430 = vld [vmem:[%s197 + $0x5e0] sm:$0xff]
        %v431 = vld [vmem:[%s197 + $0x5e8] sm:$0xff]
        %v432 = vld [vmem:[%s197 + $0x5f0] sm:$0xff]
        %v433 = vld [vmem:[%s197 + $0x5f8] sm:$0xff]
        %v434 = vld [vmem:[%s197 + $0x600] sm:$0xff]
        %v435 = vld [vmem:[%s197 + $0x608] sm:$0xff]
        %v436 = vld [vmem:[%s197 + $0x610] sm:$0xff]
        %v437 = vld [vmem:[%s197 + $0x618] sm:$0xff]
        %v438 = vld [vmem:[%s197 + $0x620] sm:$0xff]
        %v439 = vld [vmem:[%s197 + $0x628] sm:$0xff]
        %v440 = vld [vmem:[%s197 + $0x630] sm:$0xff]
        %v441 = vld [vmem:[%s197 + $0x638] sm:$0xff]
        %v442 = vld [vmem:[%s197 + $0x640] sm:$0xff]
        %v443 = vld [vmem:[%s197 + $0x648] sm:$0xff]
        %v444 = vld [vmem:[%s197 + $0x650] sm:$0xff]
        %v445 = vld [vmem:[%s197 + $0x658] sm:$0xff]
        %v446 = vld [vmem:[%s197 + $0x660] sm:$0xff]
        %v447 = vld [vmem:[%s197 + $0x668] sm:$0xff]
        %v448 = vld [vmem:[%s197 + $0x670] sm:$0xff]
        %v449 = vld [vmem:[%s197 + $0x678] sm:$0xff]
        %v450 = vld [vmem:[%s197 + $0x680] sm:$0xff]
        %v451 = vld [vmem:[%s197 + $0x688] sm:$0xff]
        %v452 = vld [vmem:[%s197 + $0x690] sm:$0xff]
        %v453 = vld [vmem:[%s197 + $0x698] sm:$0xff]
        %v454 = vld [vmem:[%s197 + $0x6a0] sm:$0xff]
        %v455 = vld [vmem:[%s197 + $0x6a8] sm:$0xff]
        %v456 = vld [vmem:[%s197 + $0x6b0] sm:$0xff]
        %v457 = vld [vmem:[%s197 + $0x6b8] sm:$0xff]
        %v458 = vld [vmem:[%s197 + $0x6c0] sm:$0xff]
        %v459 = vld [vmem:[%s197 + $0x6c8] sm:$0xff]
        %v460 = vld [vmem:[%s197 + $0x6d0] sm:$0xff]
        %v461 = vld [vmem:[%s197 + $0x6d8] sm:$0xff]
        %v462 = vld [vmem:[%s197 + $0x6e0] sm:$0xff]
        %v463 = vld [vmem:[%s197 + $0x6e8] sm:$0xff]
        %v464 = vld [vmem:[%s197 + $0x6f0] sm:$0xff]
        %v465 = vld [vmem:[%s197 + $0x6f8] sm:$0xff]
        %v466 = vld [vmem:[%s197 + $0x700] sm:$0xff]
        %v467 = vld [vmem:[%s197 + $0x708] sm:$0xff]
        %v468 = vld [vmem:[%s197 + $0x710] sm:$0xff]
        %v469 = vld [vmem:[%s197 + $0x718] sm:$0xff]
        %v470 = vld [vmem:[%s197 + $0x720] sm:$0xff]
        %v471 = vld [vmem:[%s197 + $0x728] sm:$0xff]
        %v472 = vld [vmem:[%s197 + $0x730] sm:$0xff]
        %v473 = vld [vmem:[%s197 + $0x738] sm:$0xff]
        %v474 = vld [vmem:[%s197 + $0x740] sm:$0xff]
        %v475 = vld [vmem:[%s197 + $0x748] sm:$0xff]
        %v476 = vld [vmem:[%s197 + $0x750] sm:$0xff]
        %v477 = vld [vmem:[%s197 + $0x758] sm:$0xff]
        %v478 = vld [vmem:[%s197 + $0x760] sm:$0xff]
        %v479 = vld [vmem:[%s197 + $0x768] sm:$0xff]
        %v480 = vld [vmem:[%s197 + $0x770] sm:$0xff]
        %v481 = vld [vmem:[%s197 + $0x778] sm:$0xff]
        %v482 = vld [vmem:[%s197 + $0x780] sm:$0xff]
        %v483 = vld [vmem:[%s197 + $0x788] sm:$0xff]
        %v484 = vld [vmem:[%s197 + $0x790] sm:$0xff]
        %v485 = vld [vmem:[%s197 + $0x798] sm:$0xff]
        %v486 = vld [vmem:[%s197 + $0x7a0] sm:$0xff]
        %v487 = vld [vmem:[%s197 + $0x7a8] sm:$0xff]
        %v488 = vld [vmem:[%s197 + $0x7b0] sm:$0xff]
        %v489 = vld [vmem:[%s197 + $0x7b8] sm:$0xff]
        %v490 = vld [vmem:[%s197 + $0x7c0] sm:$0xff]
        %v491 = vld [vmem:[%s197 + $0x7c8] sm:$0xff]
        %v492 = vld [vmem:[%s197 + $0x7d0] sm:$0xff]
        %v493 = vld [vmem:[%s197 + $0x7d8] sm:$0xff]
        %v494 = vld [vmem:[%s197 + $0x7e0] sm:$0xff]
        %v495 = vld [vmem:[%s197 + $0x7e8] sm:$0xff]
        %v496 = vld [vmem:[%s197 + $0x7f0] sm:$0xff]
        %v497 = vld [vmem:[%s197 + $0x7f8] sm:$0xff]
        %v498 = vld [vmem:[%s197 + $0x800] sm:$0xff]
        %v499 = vld [vmem:[%s197 + $0x808] sm:$0xff]
        %v500 = vld [vmem:[%s197 + $0x810] sm:$0xff]
        %v501 = vld [vmem:[%s197 + $0x818] sm:$0xff]
        %v502 = vld [vmem:[%s197 + $0x820] sm:$0xff]
        %v503 = vld [vmem:[%s197 + $0x828] sm:$0xff]
        %v504 = vld [vmem:[%s197 + $0x830] sm:$0xff]
        %v505 = vld [vmem:[%s197 + $0x838] sm:$0xff]
        %v506 = vld [vmem:[%s197 + $0x840] sm:$0xff]
        %v507 = vld [vmem:[%s197 + $0x848] sm:$0xff]
        %v508 = vld [vmem:[%s197 + $0x850] sm:$0xff]
        %v509 = vld [vmem:[%s197 + $0x858] sm:$0xff]
        %v510 = vld [vmem:[%s197 + $0x860] sm:$0xff]
        %v511 = vld [vmem:[%s197 + $0x868] sm:$0xff]
        %v512 = vld [vmem:[%s197 + $0x870] sm:$0xff]
        %v513 = vld [vmem:[%s197 + $0x878] sm:$0xff]
        %v514 = vld [vmem:[#allocation5] sm:$0xff]
        %v515 = vld [vmem:[#allocation5 + $0x8] sm:$0xff]
        %v516 = vld [vmem:[#allocation5 + $0x10] sm:$0xff]
        %v517 = vld [vmem:[#allocation5 + $0x18] sm:$0xff]
        %v518 = vld [vmem:[#allocation5 + $0x20] sm:$0xff]
        %v519 = vld [vmem:[#allocation5 + $0x28] sm:$0xff]
        %v520 = vld [vmem:[#allocation5 + $0x30] sm:$0xff]
        %v521 = vld [vmem:[#allocation5 + $0x38] sm:$0xff]
        %v522 = vld [vmem:[#allocation5 + $0x40] sm:$0xff]
        %v523 = vld [vmem:[#allocation5 + $0x48] sm:$0xff]
        %v524 = vld [vmem:[#allocation5 + $0x50] sm:$0xff]
        %v525 = vld [vmem:[#allocation5 + $0x58] sm:$0xff]
        %v526 = vld [vmem:[#allocation5 + $0x60] sm:$0xff]
        %v527 = vld [vmem:[#allocation5 + $0x68] sm:$0xff]
        %v528 = vld [vmem:[#allocation5 + $0x70] sm:$0xff]
        %v529 = vld [vmem:[#allocation5 + $0x78] sm:$0xff]
        %v530 = vld [vmem:[#allocation5 + $0x80] sm:$0xff]
        %v531 = vld [vmem:[#allocation5 + $0x88] sm:$0xff]
        %v532 = vld [vmem:[#allocation5 + $0x90] sm:$0xff]
        %v533 = vld [vmem:[#allocation5 + $0x98] sm:$0xff]
        %v534 = vld [vmem:[#allocation5 + $0xa0] sm:$0xff]
        %v535 = vld [vmem:[#allocation5 + $0xa8] sm:$0xff]
        %v536 = vld [vmem:[#allocation5 + $0xb0] sm:$0xff]
        %v537 = vld [vmem:[#allocation5 + $0xb8] sm:$0xff]
        %v538 = vld [vmem:[#allocation5 + $0xc0] sm:$0xff]
        %v539 = vld [vmem:[#allocation5 + $0xc8] sm:$0xff]
        %v540 = vld [vmem:[#allocation5 + $0xd0] sm:$0xff]
        %v541 = vld [vmem:[#allocation5 + $0xd8] sm:$0xff]
        %v542 = vld [vmem:[#allocation5 + $0xe0] sm:$0xff]
        %v543 = vld [vmem:[#allocation5 + $0xe8] sm:$0xff]
        %v544 = vld [vmem:[#allocation5 + $0xf0] sm:$0xff]
        %v545 = vld [vmem:[#allocation5 + $0xf8] sm:$0xff]
        %v546 = vld [vmem:[#allocation5 + $0x100] sm:$0xff]
        %v547 = vld [vmem:[#allocation5 + $0x108] sm:$0xff]
        %v548 = vld [vmem:[#allocation5 + $0x110] sm:$0xff]
        %v549 = vld [vmem:[#allocation5 + $0x118] sm:$0xff]
        %v550 = vld [vmem:[#allocation5 + $0x120] sm:$0xff]
        %v551 = vld [vmem:[#allocation5 + $0x128] sm:$0xff]
        %v552 = vld [vmem:[#allocation5 + $0x130] sm:$0xff]
        %v553 = vld [vmem:[#allocation5 + $0x138] sm:$0xff]
        %v554 = vld [vmem:[#allocation5 + $0x140] sm:$0xff]
        %v555 = vld [vmem:[#allocation5 + $0x148] sm:$0xff]
        %v556 = vld [vmem:[#allocation5 + $0x150] sm:$0xff]
        %v557 = vld [vmem:[#allocation5 + $0x158] sm:$0xff]
        %v558 = vld [vmem:[#allocation5 + $0x160] sm:$0xff]
        %v559 = vld [vmem:[#allocation5 + $0x168] sm:$0xff]
        %v560 = vld [vmem:[#allocation5 + $0x170] sm:$0xff]
        %v561 = vld [vmem:[#allocation5 + $0x178] sm:$0xff]
        %v562 = vld [vmem:[#allocation5 + $0x180] sm:$0xff]
        %v563 = vld [vmem:[#allocation5 + $0x188] sm:$0xff]
        %v564 = vld [vmem:[#allocation5 + $0x190] sm:$0xff]
        %v565 = vld [vmem:[#allocation5 + $0x198] sm:$0xff]
        %v566 = vld [vmem:[#allocation5 + $0x1a0] sm:$0xff]
        %v567 = vld [vmem:[#allocation5 + $0x1a8] sm:$0xff]
        %v568 = vld [vmem:[#allocation5 + $0x1b0] sm:$0xff]
        %v569 = vld [vmem:[#allocation5 + $0x1b8] sm:$0xff]
        %v570 = vld [vmem:[#allocation5 + $0x1c0] sm:$0xff]
        %v571 = vld [vmem:[#allocation5 + $0x1c8] sm:$0xff]
        %v572 = vld [vmem:[#allocation5 + $0x1d0] sm:$0xff]
        %v573 = vld [vmem:[#allocation5 + $0x1d8] sm:$0xff]
        %v574 = vld [vmem:[#allocation5 + $0x1e0] sm:$0xff]
        %v575 = vld [vmem:[#allocation5 + $0x1e8] sm:$0xff]
        %v576 = vld [vmem:[#allocation5 + $0x1f0] sm:$0xff]
        %v577 = vld [vmem:[#allocation5 + $0x1f8] sm:$0xff]
        %v578 = vld [vmem:[#allocation5 + $0x200] sm:$0xff]
        %v579 = vld [vmem:[#allocation5 + $0x208] sm:$0xff]
        %v580 = vld [vmem:[#allocation5 + $0x210] sm:$0xff]
        %v581 = vld [vmem:[#allocation5 + $0x218] sm:$0xff]
        %v582 = vld [vmem:[#allocation5 + $0x220] sm:$0xff]
        %v583 = vld [vmem:[#allocation5 + $0x228] sm:$0xff]
        %v584 = vld [vmem:[#allocation5 + $0x230] sm:$0xff]
        %v585 = vld [vmem:[#allocation5 + $0x238] sm:$0xff]
        %v586 = vld [vmem:[#allocation5 + $0x240] sm:$0xff]
        %v587 = vld [vmem:[#allocation5 + $0x248] sm:$0xff]
        %v588 = vld [vmem:[#allocation5 + $0x250] sm:$0xff]
        %v589 = vld [vmem:[#allocation5 + $0x258] sm:$0xff]
        %v590 = vld [vmem:[#allocation5 + $0x260] sm:$0xff]
        %v591 = vld [vmem:[#allocation5 + $0x268] sm:$0xff]
        %v592 = vld [vmem:[#allocation5 + $0x270] sm:$0xff]
        %v593 = vld [vmem:[#allocation5 + $0x278] sm:$0xff]
        %v594 = vld [vmem:[#allocation5 + $0x280] sm:$0xff]
        %v595 = vld [vmem:[#allocation5 + $0x288] sm:$0xff]
        %v596 = vld [vmem:[#allocation5 + $0x290] sm:$0xff]
        %v597 = vld [vmem:[#allocation5 + $0x298] sm:$0xff]
        %v598 = vld [vmem:[#allocation5 + $0x2a0] sm:$0xff]
        %v599 = vld [vmem:[#allocation5 + $0x2a8] sm:$0xff]
        %v600 = vld [vmem:[#allocation5 + $0x2b0] sm:$0xff]
        %v601 = vld [vmem:[#allocation5 + $0x2b8] sm:$0xff]
        %v602 = vld [vmem:[#allocation5 + $0x2c0] sm:$0xff]
        %v603 = vld [vmem:[#allocation5 + $0x2c8] sm:$0xff]
        %v604 = vld [vmem:[#allocation5 + $0x2d0] sm:$0xff]
        %v605 = vld [vmem:[#allocation5 + $0x2d8] sm:$0xff]
        %v606 = vld [vmem:[#allocation5 + $0x2e0] sm:$0xff]
        %v607 = vld [vmem:[#allocation5 + $0x2e8] sm:$0xff]
        %v608 = vld [vmem:[#allocation5 + $0x2f0] sm:$0xff]
        %v609 = vld [vmem:[#allocation5 + $0x2f8] sm:$0xff]
        %v610 = vld [vmem:[#allocation5 + $0x300] sm:$0xff]
        %v611 = vld [vmem:[#allocation5 + $0x308] sm:$0xff]
        %v612 = vld [vmem:[#allocation5 + $0x310] sm:$0xff]
        %v613 = vld [vmem:[#allocation5 + $0x318] sm:$0xff]
        %v614 = vld [vmem:[#allocation5 + $0x320] sm:$0xff]
        %v615 = vld [vmem:[#allocation5 + $0x328] sm:$0xff]
        %v616 = vld [vmem:[#allocation5 + $0x330] sm:$0xff]
        %v617 = vld [vmem:[#allocation5 + $0x338] sm:$0xff]
        %v618 = vld [vmem:[#allocation5 + $0x340] sm:$0xff]
        %v619 = vld [vmem:[#allocation5 + $0x348] sm:$0xff]
        %v620 = vld [vmem:[#allocation5 + $0x350] sm:$0xff]
        %v621 = vld [vmem:[#allocation5 + $0x358] sm:$0xff]
        %v622 = vld [vmem:[#allocation5 + $0x360] sm:$0xff]
        %v623 = vld [vmem:[#allocation5 + $0x368] sm:$0xff]
        %v624 = vld [vmem:[#allocation5 + $0x370] sm:$0xff]
        %v625 = vld [vmem:[#allocation5 + $0x378] sm:$0xff]
        %v626 = vld [vmem:[#allocation5 + $0x380] sm:$0xff]
        %v627 = vld [vmem:[#allocation5 + $0x388] sm:$0xff]
        %v628 = vld [vmem:[#allocation5 + $0x390] sm:$0xff]
        %v629 = vld [vmem:[#allocation5 + $0x398] sm:$0xff]
        %v630 = vld [vmem:[#allocation5 + $0x3a0] sm:$0xff]
        %v631 = vld [vmem:[#allocation5 + $0x3a8] sm:$0xff]
        %v632 = vld [vmem:[#allocation5 + $0x3b0] sm:$0xff]
        %v633 = vld [vmem:[#allocation5 + $0x3b8] sm:$0xff]
        %v634 = vld [vmem:[#allocation5 + $0x3c0] sm:$0xff]
        %v635 = vld [vmem:[#allocation5 + $0x3c8] sm:$0xff]
        %v636 = vld [vmem:[#allocation5 + $0x3d0] sm:$0xff]
        %v637 = vld [vmem:[#allocation5 + $0x3d8] sm:$0xff]
        %v638 = vld [vmem:[#allocation5 + $0x3e0] sm:$0xff]
        %v639 = vld [vmem:[#allocation5 + $0x3e8] sm:$0xff]
        %v640 = vld [vmem:[#allocation5 + $0x3f0] sm:$0xff]
        %v641 = vld [vmem:[#allocation5 + $0x3f8] sm:$0xff]
        %v642 = vld [vmem:[#allocation5 + $0x400] sm:$0xff]
        %v643 = vld [vmem:[#allocation5 + $0x408] sm:$0xff]
        %v644 = vld [vmem:[#allocation5 + $0x410] sm:$0xff]
        %v645 = vld [vmem:[#allocation5 + $0x418] sm:$0xff]
        %v646 = vld [vmem:[#allocation5 + $0x420] sm:$0xff]
        %v647 = vld [vmem:[#allocation5 + $0x428] sm:$0xff]
        %v648 = vld [vmem:[#allocation5 + $0x430] sm:$0xff]
        %v649 = vld [vmem:[#allocation5 + $0x438] sm:$0xff]
        %v650 = vld [vmem:[#allocation5 + $0x440] sm:$0xff]
        %v651 = vld [vmem:[#allocation5 + $0x448] sm:$0xff]
        %v652 = vld [vmem:[#allocation5 + $0x450] sm:$0xff]
        %v653 = vld [vmem:[#allocation5 + $0x458] sm:$0xff]
        %v654 = vld [vmem:[#allocation5 + $0x460] sm:$0xff]
        %v655 = vld [vmem:[#allocation5 + $0x468] sm:$0xff]
        %v656 = vld [vmem:[#allocation5 + $0x470] sm:$0xff]
        %v657 = vld [vmem:[#allocation5 + $0x478] sm:$0xff]
        %v658 = vld [vmem:[#allocation5 + $0x480] sm:$0xff]
        %v659 = vld [vmem:[#allocation5 + $0x488] sm:$0xff]
        %v660 = vld [vmem:[#allocation5 + $0x490] sm:$0xff]
        %v661 = vld [vmem:[#allocation5 + $0x498] sm:$0xff]
        %v662 = vld [vmem:[#allocation5 + $0x4a0] sm:$0xff]
        %v663 = vld [vmem:[#allocation5 + $0x4a8] sm:$0xff]
        %v664 = vld [vmem:[#allocation5 + $0x4b0] sm:$0xff]
        %v665 = vld [vmem:[#allocation5 + $0x4b8] sm:$0xff]
        %v666 = vld [vmem:[#allocation5 + $0x4c0] sm:$0xff]
        %v667 = vld [vmem:[#allocation5 + $0x4c8] sm:$0xff]
        %v668 = vld [vmem:[#allocation5 + $0x4d0] sm:$0xff]
        %v669 = vld [vmem:[#allocation5 + $0x4d8] sm:$0xff]
        %v670 = vld [vmem:[#allocation5 + $0x4e0] sm:$0xff]
        %v671 = vld [vmem:[#allocation5 + $0x4e8] sm:$0xff]
        %v672 = vld [vmem:[#allocation5 + $0x4f0] sm:$0xff]
        %v673 = vld [vmem:[#allocation5 + $0x4f8] sm:$0xff]
        %v674 = vld [vmem:[#allocation5 + $0x500] sm:$0xff]
        %v675 = vld [vmem:[#allocation5 + $0x508] sm:$0xff]
        %v676 = vld [vmem:[#allocation5 + $0x510] sm:$0xff]
        %v677 = vld [vmem:[#allocation5 + $0x518] sm:$0xff]
        %v678 = vld [vmem:[#allocation5 + $0x520] sm:$0xff]
        %v679 = vld [vmem:[#allocation5 + $0x528] sm:$0xff]
        %v680 = vld [vmem:[#allocation5 + $0x530] sm:$0xff]
        %v681 = vld [vmem:[#allocation5 + $0x538] sm:$0xff]
        %v682 = vld [vmem:[#allocation5 + $0x540] sm:$0xff]
        %v683 = vld [vmem:[#allocation5 + $0x548] sm:$0xff]
        %v684 = vld [vmem:[#allocation5 + $0x550] sm:$0xff]
        %v685 = vld [vmem:[#allocation5 + $0x558] sm:$0xff]
        %v686 = vld [vmem:[#allocation5 + $0x560] sm:$0xff]
        %v687 = vld [vmem:[#allocation5 + $0x568] sm:$0xff]
        %v688 = vld [vmem:[#allocation5 + $0x570] sm:$0xff]
        %v689 = vld [vmem:[#allocation5 + $0x578] sm:$0xff]
        %v690 = vld [vmem:[#allocation5 + $0x580] sm:$0xff]
        %v691 = vld [vmem:[#allocation5 + $0x588] sm:$0xff]
        %v692 = vld [vmem:[#allocation5 + $0x590] sm:$0xff]
        %v693 = vld [vmem:[#allocation5 + $0x598] sm:$0xff]
        %v694 = vld [vmem:[#allocation5 + $0x5a0] sm:$0xff]
        %v695 = vld [vmem:[#allocation5 + $0x5a8] sm:$0xff]
        %v696 = vld [vmem:[#allocation5 + $0x5b0] sm:$0xff]
        %v697 = vld [vmem:[#allocation5 + $0x5b8] sm:$0xff]
        %v698 = vld [vmem:[#allocation5 + $0x5c0] sm:$0xff]
        %v699 = vld [vmem:[#allocation5 + $0x5c8] sm:$0xff]
        %v700 = vld [vmem:[#allocation5 + $0x5d0] sm:$0xff]
        %v701 = vld [vmem:[#allocation5 + $0x5d8] sm:$0xff]
        %v702 = vld [vmem:[#allocation5 + $0x5e0] sm:$0xff]
        %v703 = vld [vmem:[#allocation5 + $0x5e8] sm:$0xff]
        %v704 = vld [vmem:[#allocation5 + $0x5f0] sm:$0xff]
        %v705 = vld [vmem:[#allocation5 + $0x5f8] sm:$0xff]
        %v706 = vld [vmem:[#allocation5 + $0x600] sm:$0xff]
        %v707 = vld [vmem:[#allocation5 + $0x608] sm:$0xff]
        %v708 = vld [vmem:[#allocation5 + $0x610] sm:$0xff]
        %v709 = vld [vmem:[#allocation5 + $0x618] sm:$0xff]
        %v710 = vld [vmem:[#allocation5 + $0x620] sm:$0xff]
        %v711 = vld [vmem:[#allocation5 + $0x628] sm:$0xff]
        %v712 = vld [vmem:[#allocation5 + $0x630] sm:$0xff]
        %v713 = vld [vmem:[#allocation5 + $0x638] sm:$0xff]
        %v714 = vld [vmem:[#allocation5 + $0x640] sm:$0xff]
        %v715 = vld [vmem:[#allocation5 + $0x648] sm:$0xff]
        %v716 = vld [vmem:[#allocation5 + $0x650] sm:$0xff]
        %v717 = vld [vmem:[#allocation5 + $0x658] sm:$0xff]
        %v718 = vld [vmem:[#allocation5 + $0x660] sm:$0xff]
        %v719 = vld [vmem:[#allocation5 + $0x668] sm:$0xff]
        %v720 = vld [vmem:[#allocation5 + $0x670] sm:$0xff]
        %v721 = vld [vmem:[#allocation5 + $0x678] sm:$0xff]
        %v722 = vld [vmem:[#allocation5 + $0x680] sm:$0xff]
        %v723 = vld [vmem:[#allocation5 + $0x688] sm:$0xff]
        %v724 = vld [vmem:[#allocation5 + $0x690] sm:$0xff]
        %v725 = vld [vmem:[#allocation5 + $0x698] sm:$0xff]
        %v726 = vld [vmem:[#allocation5 + $0x6a0] sm:$0xff]
        %v727 = vld [vmem:[#allocation5 + $0x6a8] sm:$0xff]
        %v728 = vld [vmem:[#allocation5 + $0x6b0] sm:$0xff]
        %v729 = vld [vmem:[#allocation5 + $0x6b8] sm:$0xff]
        %v730 = vld [vmem:[#allocation5 + $0x6c0] sm:$0xff]
        %v731 = vld [vmem:[#allocation5 + $0x6c8] sm:$0xff]
        %v732 = vld [vmem:[#allocation5 + $0x6d0] sm:$0xff]
        %v733 = vld [vmem:[#allocation5 + $0x6d8] sm:$0xff]
        %v734 = vld [vmem:[#allocation5 + $0x6e0] sm:$0xff]
        %v735 = vld [vmem:[#allocation5 + $0x6e8] sm:$0xff]
        %v736 = vld [vmem:[#allocation5 + $0x6f0] sm:$0xff]
        %v737 = vld [vmem:[#allocation5 + $0x6f8] sm:$0xff]
        %v738 = vld [vmem:[#allocation5 + $0x700] sm:$0xff]
        %v739 = vld [vmem:[#allocation5 + $0x708] sm:$0xff]
        %v740 = vld [vmem:[#allocation5 + $0x710] sm:$0xff]
        %v741 = vld [vmem:[#allocation5 + $0x718] sm:$0xff]
        %v742 = vld [vmem:[#allocation5 + $0x720] sm:$0xff]
        %v743 = vld [vmem:[#allocation5 + $0x728] sm:$0xff]
        %v744 = vld [vmem:[#allocation5 + $0x730] sm:$0xff]
        %v745 = vld [vmem:[#allocation5 + $0x738] sm:$0xff]
        %v746 = vld [vmem:[#allocation5 + $0x740] sm:$0xff]
        %v747 = vld [vmem:[#allocation5 + $0x748] sm:$0xff]
        %v748 = vld [vmem:[#allocation5 + $0x750] sm:$0xff]
        %v749 = vld [vmem:[#allocation5 + $0x758] sm:$0xff]
        %v750 = vld [vmem:[#allocation5 + $0x760] sm:$0xff]
        %v751 = vld [vmem:[#allocation5 + $0x768] sm:$0xff]
        %v752 = vld [vmem:[#allocation5 + $0x770] sm:$0xff]
        %v753 = vld [vmem:[#allocation5 + $0x778] sm:$0xff]
        %v754 = vld [vmem:[#allocation5 + $0x780] sm:$0xff]
        %v755 = vld [vmem:[#allocation5 + $0x788] sm:$0xff]
        %v756 = vld [vmem:[#allocation5 + $0x790] sm:$0xff]
        %v757 = vld [vmem:[#allocation5 + $0x798] sm:$0xff]
        %v758 = vld [vmem:[#allocation5 + $0x7a0] sm:$0xff]
        %v759 = vld [vmem:[#allocation5 + $0x7a8] sm:$0xff]
        %v760 = vld [vmem:[#allocation5 + $0x7b0] sm:$0xff]
        %v761 = vld [vmem:[#allocation5 + $0x7b8] sm:$0xff]
        %v762 = vld [vmem:[#allocation5 + $0x7c0] sm:$0xff]
        %v763 = vld [vmem:[#allocation5 + $0x7c8] sm:$0xff]
        %v764 = vld [vmem:[#allocation5 + $0x7d0] sm:$0xff]
        %v765 = vld [vmem:[#allocation5 + $0x7d8] sm:$0xff]
        %v766 = vld [vmem:[#allocation5 + $0x7e0] sm:$0xff]
        %v767 = vld [vmem:[#allocation5 + $0x7e8] sm:$0xff]
        %v768 = vld [vmem:[#allocation5 + $0x7f0] sm:$0xff]
        %v769 = vld [vmem:[#allocation5 + $0x7f8] sm:$0xff]
        %v770 = vld [vmem:[#allocation7] sm:$0x1]
        %v772 = vperm.slane %v770, 0
        %774 = vmatpush.msra.mxu0 %v529
        %775 = vmatpush.msra.mxu0 %v528
        %776 = vmatpush.msra.mxu0 %v527
        %777 = vmatpush.msra.mxu0 %v526
        %778 = vmatpush.msra.mxu0 %v525
        %779 = vmatpush.msra.mxu0 %v524
        %780 = vmatpush.msra.mxu0 %v523
        %781 = vmatpush.msra.mxu0 %v522
        %782 = vmatpush.msra.mxu0 %v521
        %783 = vmatpush.msra.mxu0 %v520
        %784 = vmatpush.msra.mxu0 %v519
        %785 = vmatpush.msra.mxu0 %v518
        %786 = vmatpush.msra.mxu0 %v517
        %787 = vmatpush.msra.mxu0 %v516
        %788 = vmatpush.msra.mxu0 %v515
        %789 = vmatpush.msra.mxu0 %v514
        %790 = vmatmul.f32.gmra.mxu0 %v242
        %v791 = vpop.f32.mrf.mxu0
        %v792 = vadd.f32 %v772, %v791
        %793 = vmatmul.f32.gmra.mxu0 %v258
        %v794 = vpop.f32.mrf.mxu0
        %v795 = vadd.f32 %v772, %v794
        %796 = vmatmul.f32.gmra.mxu0 %v274
        %v797 = vpop.f32.mrf.mxu0
        %v798 = vadd.f32 %v772, %v797
        %799 = vmatmul.f32.gmra.mxu0 %v290
        %v800 = vpop.f32.mrf.mxu0
        %v801 = vadd.f32 %v772, %v800
        %802 = vmatmul.f32.gmra.mxu0 %v306
        %v803 = vpop.f32.mrf.mxu0
        %v804 = vadd.f32 %v772, %v803
        %805 = vmatmul.f32.gmra.mxu0 %v322
        %v806 = vpop.f32.mrf.mxu0
        %v807 = vadd.f32 %v772, %v806
        %808 = vmatmul.f32.gmra.mxu0 %v338
        %v809 = vpop.f32.mrf.mxu0
        %v810 = vadd.f32 %v772, %v809
        %811 = vmatmul.f32.gmra.mxu0 %v354
        %v812 = vpop.f32.mrf.mxu0
        %v813 = vadd.f32 %v772, %v812
        %814 = vmatmul.f32.gmra.mxu0 %v370
        %v815 = vpop.f32.mrf.mxu0
        %v816 = vadd.f32 %v772, %v815
        %817 = vmatmul.f32.gmra.mxu0 %v386
        %v818 = vpop.f32.mrf.mxu0
        %v819 = vadd.f32 %v772, %v818
        %820 = vmatmul.f32.gmra.mxu0 %v402
        %v821 = vpop.f32.mrf.mxu0
        %v822 = vadd.f32 %v772, %v821
        %823 = vmatmul.f32.gmra.mxu0 %v418
        %v824 = vpop.f32.mrf.mxu0
        %v825 = vadd.f32 %v772, %v824
        %826 = vmatmul.f32.gmra.mxu0 %v434
        %v827 = vpop.f32.mrf.mxu0
        %v828 = vadd.f32 %v772, %v827
        %829 = vmatmul.f32.gmra.mxu0 %v450
        %v830 = vpop.f32.mrf.mxu0
        %v831 = vadd.f32 %v772, %v830
        %832 = vmatmul.f32.gmra.mxu0 %v466
        %v833 = vpop.f32.mrf.mxu0
        %v834 = vadd.f32 %v772, %v833
        %835 = vmatmul.f32.gmra.mxu0 %v482
        %v836 = vpop.f32.mrf.mxu0
        %v837 = vadd.f32 %v772, %v836
        %838 = vmatmul.f32.gmra.mxu0 %v498
        %v839 = vpop.f32.mrf.mxu0
        %v840 = vadd.f32 %v772, %v839
        %841 = vdwg.mxu0
        %842 = vmatpush.msra.mxu0 %v545
        %843 = vmatpush.msra.mxu0 %v544
        %844 = vmatpush.msra.mxu0 %v543
        %845 = vmatpush.msra.mxu0 %v542
        %846 = vmatpush.msra.mxu0 %v541
        %847 = vmatpush.msra.mxu0 %v540
        %848 = vmatpush.msra.mxu0 %v539
        %849 = vmatpush.msra.mxu0 %v538
        %850 = vmatpush.msra.mxu0 %v537
        %851 = vmatpush.msra.mxu0 %v536
        %852 = vmatpush.msra.mxu0 %v535
        %853 = vmatpush.msra.mxu0 %v534
        %854 = vmatpush.msra.mxu0 %v533
        %855 = vmatpush.msra.mxu0 %v532
        %856 = vmatpush.msra.mxu0 %v531
        %857 = vmatpush.msra.mxu0 %v530
        %858 = vmatmul.f32.gmra.mxu0 %v243
        %v859 = vpop.f32.mrf.mxu0
        %v860 = vadd.f32 %v792, %v859
        %861 = vmatmul.f32.gmra.mxu0 %v259
        %v862 = vpop.f32.mrf.mxu0
        %v863 = vadd.f32 %v795, %v862
        %864 = vmatmul.f32.gmra.mxu0 %v275
        %v865 = vpop.f32.mrf.mxu0
        %v866 = vadd.f32 %v798, %v865
        %867 = vmatmul.f32.gmra.mxu0 %v291
        %v868 = vpop.f32.mrf.mxu0
        %v869 = vadd.f32 %v801, %v868
        %870 = vmatmul.f32.gmra.mxu0 %v307
        %v871 = vpop.f32.mrf.mxu0
        %v872 = vadd.f32 %v804, %v871
        %873 = vmatmul.f32.gmra.mxu0 %v323
        %v874 = vpop.f32.mrf.mxu0
        %v875 = vadd.f32 %v807, %v874
        %876 = vmatmul.f32.gmra.mxu0 %v339
        %v877 = vpop.f32.mrf.mxu0
        %v878 = vadd.f32 %v810, %v877
        %879 = vmatmul.f32.gmra.mxu0 %v355
        %v880 = vpop.f32.mrf.mxu0
        %v881 = vadd.f32 %v813, %v880
        %882 = vmatmul.f32.gmra.mxu0 %v371
        %v883 = vpop.f32.mrf.mxu0
        %v884 = vadd.f32 %v816, %v883
        %885 = vmatmul.f32.gmra.mxu0 %v387
        %v886 = vpop.f32.mrf.mxu0
        %v887 = vadd.f32 %v819, %v886
        %888 = vmatmul.f32.gmra.mxu0 %v403
        %v889 = vpop.f32.mrf.mxu0
        %v890 = vadd.f32 %v822, %v889
        %891 = vmatmul.f32.gmra.mxu0 %v419
        %v892 = vpop.f32.mrf.mxu0
        %v893 = vadd.f32 %v825, %v892
        %894 = vmatmul.f32.gmra.mxu0 %v435
        %v895 = vpop.f32.mrf.mxu0
        %v896 = vadd.f32 %v828, %v895
        %897 = vmatmul.f32.gmra.mxu0 %v451
        %v898 = vpop.f32.mrf.mxu0
        %v899 = vadd.f32 %v831, %v898
        %900 = vmatmul.f32.gmra.mxu0 %v467
        %v901 = vpop.f32.mrf.mxu0
        %v902 = vadd.f32 %v834, %v901
        %903 = vmatmul.f32.gmra.mxu0 %v483
        %v904 = vpop.f32.mrf.mxu0
        %v905 = vadd.f32 %v837, %v904
        %906 = vmatmul.f32.gmra.mxu0 %v499
        %v907 = vpop.f32.mrf.mxu0
        %v908 = vadd.f32 %v840, %v907
        %909 = vdwg.mxu0
        %910 = vmatpush.msra.mxu0 %v561
        %911 = vmatpush.msra.mxu0 %v560
        %912 = vmatpush.msra.mxu0 %v559
        %913 = vmatpush.msra.mxu0 %v558
        %914 = vmatpush.msra.mxu0 %v557
        %915 = vmatpush.msra.mxu0 %v556
        %916 = vmatpush.msra.mxu0 %v555
        %917 = vmatpush.msra.mxu0 %v554
        %918 = vmatpush.msra.mxu0 %v553
        %919 = vmatpush.msra.mxu0 %v552
        %920 = vmatpush.msra.mxu0 %v551
        %921 = vmatpush.msra.mxu0 %v550
        %922 = vmatpush.msra.mxu0 %v549
        %923 = vmatpush.msra.mxu0 %v548
        %924 = vmatpush.msra.mxu0 %v547
        %925 = vmatpush.msra.mxu0 %v546
        %926 = vmatmul.f32.gmra.mxu0 %v244
        %v927 = vpop.f32.mrf.mxu0
        %v928 = vadd.f32 %v860, %v927
        %929 = vmatmul.f32.gmra.mxu0 %v260
        %v930 = vpop.f32.mrf.mxu0
        %v931 = vadd.f32 %v863, %v930
        %932 = vmatmul.f32.gmra.mxu0 %v276
        %v933 = vpop.f32.mrf.mxu0
        %v934 = vadd.f32 %v866, %v933
        %935 = vmatmul.f32.gmra.mxu0 %v292
        %v936 = vpop.f32.mrf.mxu0
        %v937 = vadd.f32 %v869, %v936
        %938 = vmatmul.f32.gmra.mxu0 %v308
        %v939 = vpop.f32.mrf.mxu0
        %v940 = vadd.f32 %v872, %v939
        %941 = vmatmul.f32.gmra.mxu0 %v324
        %v942 = vpop.f32.mrf.mxu0
        %v943 = vadd.f32 %v875, %v942
        %944 = vmatmul.f32.gmra.mxu0 %v340
        %v945 = vpop.f32.mrf.mxu0
        %v946 = vadd.f32 %v878, %v945
        %947 = vmatmul.f32.gmra.mxu0 %v356
        %v948 = vpop.f32.mrf.mxu0
        %v949 = vadd.f32 %v881, %v948
        %950 = vmatmul.f32.gmra.mxu0 %v372
        %v951 = vpop.f32.mrf.mxu0
        %v952 = vadd.f32 %v884, %v951
        %953 = vmatmul.f32.gmra.mxu0 %v388
        %v954 = vpop.f32.mrf.mxu0
        %v955 = vadd.f32 %v887, %v954
        %956 = vmatmul.f32.gmra.mxu0 %v404
        %v957 = vpop.f32.mrf.mxu0
        %v958 = vadd.f32 %v890, %v957
        %959 = vmatmul.f32.gmra.mxu0 %v420
        %v960 = vpop.f32.mrf.mxu0
        %v961 = vadd.f32 %v893, %v960
        %962 = vmatmul.f32.gmra.mxu0 %v436
        %v963 = vpop.f32.mrf.mxu0
        %v964 = vadd.f32 %v896, %v963
        %965 = vmatmul.f32.gmra.mxu0 %v452
        %v966 = vpop.f32.mrf.mxu0
        %v967 = vadd.f32 %v899, %v966
        %968 = vmatmul.f32.gmra.mxu0 %v468
        %v969 = vpop.f32.mrf.mxu0
        %v970 = vadd.f32 %v902, %v969
        %971 = vmatmul.f32.gmra.mxu0 %v484
        %v972 = vpop.f32.mrf.mxu0
        %v973 = vadd.f32 %v905, %v972
        %974 = vmatmul.f32.gmra.mxu0 %v500
        %v975 = vpop.f32.mrf.mxu0
        %v976 = vadd.f32 %v908, %v975
        %977 = vdwg.mxu0
        %978 = vmatpush.msra.mxu0 %v577
        %979 = vmatpush.msra.mxu0 %v576
        %980 = vmatpush.msra.mxu0 %v575
        %981 = vmatpush.msra.mxu0 %v574
        %982 = vmatpush.msra.mxu0 %v573
        %983 = vmatpush.msra.mxu0 %v572
        %984 = vmatpush.msra.mxu0 %v571
        %985 = vmatpush.msra.mxu0 %v570
        %986 = vmatpush.msra.mxu0 %v569
        %987 = vmatpush.msra.mxu0 %v568
        %988 = vmatpush.msra.mxu0 %v567
        %989 = vmatpush.msra.mxu0 %v566
        %990 = vmatpush.msra.mxu0 %v565
        %991 = vmatpush.msra.mxu0 %v564
        %992 = vmatpush.msra.mxu0 %v563
        %993 = vmatpush.msra.mxu0 %v562
        %994 = vmatmul.f32.gmra.mxu0 %v245
        %v995 = vpop.f32.mrf.mxu0
        %v996 = vadd.f32 %v928, %v995
        %997 = vmatmul.f32.gmra.mxu0 %v261
        %v998 = vpop.f32.mrf.mxu0
        %v999 = vadd.f32 %v931, %v998
        %1000 = vmatmul.f32.gmra.mxu0 %v277
        %v1001 = vpop.f32.mrf.mxu0
        %v1002 = vadd.f32 %v934, %v1001
        %1003 = vmatmul.f32.gmra.mxu0 %v293
        %v1004 = vpop.f32.mrf.mxu0
        %v1005 = vadd.f32 %v937, %v1004
        %1006 = vmatmul.f32.gmra.mxu0 %v309
        %v1007 = vpop.f32.mrf.mxu0
        %v1008 = vadd.f32 %v940, %v1007
        %1009 = vmatmul.f32.gmra.mxu0 %v325
        %v1010 = vpop.f32.mrf.mxu0
        %v1011 = vadd.f32 %v943, %v1010
        %1012 = vmatmul.f32.gmra.mxu0 %v341
        %v1013 = vpop.f32.mrf.mxu0
        %v1014 = vadd.f32 %v946, %v1013
        %1015 = vmatmul.f32.gmra.mxu0 %v357
        %v1016 = vpop.f32.mrf.mxu0
        %v1017 = vadd.f32 %v949, %v1016
        %1018 = vmatmul.f32.gmra.mxu0 %v373
        %v1019 = vpop.f32.mrf.mxu0
        %v1020 = vadd.f32 %v952, %v1019
        %1021 = vmatmul.f32.gmra.mxu0 %v389
        %v1022 = vpop.f32.mrf.mxu0
        %v1023 = vadd.f32 %v955, %v1022
        %1024 = vmatmul.f32.gmra.mxu0 %v405
        %v1025 = vpop.f32.mrf.mxu0
        %v1026 = vadd.f32 %v958, %v1025
        %1027 = vmatmul.f32.gmra.mxu0 %v421
        %v1028 = vpop.f32.mrf.mxu0
        %v1029 = vadd.f32 %v961, %v1028
        %1030 = vmatmul.f32.gmra.mxu0 %v437
        %v1031 = vpop.f32.mrf.mxu0
        %v1032 = vadd.f32 %v964, %v1031
        %1033 = vmatmul.f32.gmra.mxu0 %v453
        %v1034 = vpop.f32.mrf.mxu0
        %v1035 = vadd.f32 %v967, %v1034
        %1036 = vmatmul.f32.gmra.mxu0 %v469
        %v1037 = vpop.f32.mrf.mxu0
        %v1038 = vadd.f32 %v970, %v1037
        %1039 = vmatmul.f32.gmra.mxu0 %v485
        %v1040 = vpop.f32.mrf.mxu0
        %v1041 = vadd.f32 %v973, %v1040
        %1042 = vmatmul.f32.gmra.mxu0 %v501
        %v1043 = vpop.f32.mrf.mxu0
        %v1044 = vadd.f32 %v976, %v1043
        %1045 = vdwg.mxu0
        %1046 = vmatpush.msra.mxu0 %v593
        %1047 = vmatpush.msra.mxu0 %v592
        %1048 = vmatpush.msra.mxu0 %v591
        %1049 = vmatpush.msra.mxu0 %v590
        %1050 = vmatpush.msra.mxu0 %v589
        %1051 = vmatpush.msra.mxu0 %v588
        %1052 = vmatpush.msra.mxu0 %v587
        %1053 = vmatpush.msra.mxu0 %v586
        %1054 = vmatpush.msra.mxu0 %v585
        %1055 = vmatpush.msra.mxu0 %v584
        %1056 = vmatpush.msra.mxu0 %v583
        %1057 = vmatpush.msra.mxu0 %v582
        %1058 = vmatpush.msra.mxu0 %v581
        %1059 = vmatpush.msra.mxu0 %v580
        %1060 = vmatpush.msra.mxu0 %v579
        %1061 = vmatpush.msra.mxu0 %v578
        %1062 = vmatmul.f32.gmra.mxu0 %v246
        %v1063 = vpop.f32.mrf.mxu0
        %v1064 = vadd.f32 %v996, %v1063
        %1065 = vmatmul.f32.gmra.mxu0 %v262
        %v1066 = vpop.f32.mrf.mxu0
        %v1067 = vadd.f32 %v999, %v1066
        %1068 = vmatmul.f32.gmra.mxu0 %v278
        %v1069 = vpop.f32.mrf.mxu0
        %v1070 = vadd.f32 %v1002, %v1069
        %1071 = vmatmul.f32.gmra.mxu0 %v294
        %v1072 = vpop.f32.mrf.mxu0
        %v1073 = vadd.f32 %v1005, %v1072
        %1074 = vmatmul.f32.gmra.mxu0 %v310
        %v1075 = vpop.f32.mrf.mxu0
        %v1076 = vadd.f32 %v1008, %v1075
        %1077 = vmatmul.f32.gmra.mxu0 %v326
        %v1078 = vpop.f32.mrf.mxu0
        %v1079 = vadd.f32 %v1011, %v1078
        %1080 = vmatmul.f32.gmra.mxu0 %v342
        %v1081 = vpop.f32.mrf.mxu0
        %v1082 = vadd.f32 %v1014, %v1081
        %1083 = vmatmul.f32.gmra.mxu0 %v358
        %v1084 = vpop.f32.mrf.mxu0
        %v1085 = vadd.f32 %v1017, %v1084
        %1086 = vmatmul.f32.gmra.mxu0 %v374
        %v1087 = vpop.f32.mrf.mxu0
        %v1088 = vadd.f32 %v1020, %v1087
        %1089 = vmatmul.f32.gmra.mxu0 %v390
        %v1090 = vpop.f32.mrf.mxu0
        %v1091 = vadd.f32 %v1023, %v1090
        %1092 = vmatmul.f32.gmra.mxu0 %v406
        %v1093 = vpop.f32.mrf.mxu0
        %v1094 = vadd.f32 %v1026, %v1093
        %1095 = vmatmul.f32.gmra.mxu0 %v422
        %v1096 = vpop.f32.mrf.mxu0
        %v1097 = vadd.f32 %v1029, %v1096
        %1098 = vmatmul.f32.gmra.mxu0 %v438
        %v1099 = vpop.f32.mrf.mxu0
        %v1100 = vadd.f32 %v1032, %v1099
        %1101 = vmatmul.f32.gmra.mxu0 %v454
        %v1102 = vpop.f32.mrf.mxu0
        %v1103 = vadd.f32 %v1035, %v1102
        %1104 = vmatmul.f32.gmra.mxu0 %v470
        %v1105 = vpop.f32.mrf.mxu0
        %v1106 = vadd.f32 %v1038, %v1105
        %1107 = vmatmul.f32.gmra.mxu0 %v486
        %v1108 = vpop.f32.mrf.mxu0
        %v1109 = vadd.f32 %v1041, %v1108
        %1110 = vmatmul.f32.gmra.mxu0 %v502
        %v1111 = vpop.f32.mrf.mxu0
        %v1112 = vadd.f32 %v1044, %v1111
        %1113 = vdwg.mxu0
        %1114 = vmatpush.msra.mxu0 %v609
        %1115 = vmatpush.msra.mxu0 %v608
        %1116 = vmatpush.msra.mxu0 %v607
        %1117 = vmatpush.msra.mxu0 %v606
        %1118 = vmatpush.msra.mxu0 %v605
        %1119 = vmatpush.msra.mxu0 %v604
        %1120 = vmatpush.msra.mxu0 %v603
        %1121 = vmatpush.msra.mxu0 %v602
        %1122 = vmatpush.msra.mxu0 %v601
        %1123 = vmatpush.msra.mxu0 %v600
        %1124 = vmatpush.msra.mxu0 %v599
        %1125 = vmatpush.msra.mxu0 %v598
        %1126 = vmatpush.msra.mxu0 %v597
        %1127 = vmatpush.msra.mxu0 %v596
        %1128 = vmatpush.msra.mxu0 %v595
        %1129 = vmatpush.msra.mxu0 %v594
        %1130 = vmatmul.f32.gmra.mxu0 %v247
        %v1131 = vpop.f32.mrf.mxu0
        %v1132 = vadd.f32 %v1064, %v1131
        %1133 = vmatmul.f32.gmra.mxu0 %v263
        %v1134 = vpop.f32.mrf.mxu0
        %v1135 = vadd.f32 %v1067, %v1134
        %1136 = vmatmul.f32.gmra.mxu0 %v279
        %v1137 = vpop.f32.mrf.mxu0
        %v1138 = vadd.f32 %v1070, %v1137
        %1139 = vmatmul.f32.gmra.mxu0 %v295
        %v1140 = vpop.f32.mrf.mxu0
        %v1141 = vadd.f32 %v1073, %v1140
        %1142 = vmatmul.f32.gmra.mxu0 %v311
        %v1143 = vpop.f32.mrf.mxu0
        %v1144 = vadd.f32 %v1076, %v1143
        %1145 = vmatmul.f32.gmra.mxu0 %v327
        %v1146 = vpop.f32.mrf.mxu0
        %v1147 = vadd.f32 %v1079, %v1146
        %1148 = vmatmul.f32.gmra.mxu0 %v343
        %v1149 = vpop.f32.mrf.mxu0
        %v1150 = vadd.f32 %v1082, %v1149
        %1151 = vmatmul.f32.gmra.mxu0 %v359
        %v1152 = vpop.f32.mrf.mxu0
        %v1153 = vadd.f32 %v1085, %v1152
        %1154 = vmatmul.f32.gmra.mxu0 %v375
        %v1155 = vpop.f32.mrf.mxu0
        %v1156 = vadd.f32 %v1088, %v1155
        %1157 = vmatmul.f32.gmra.mxu0 %v391
        %v1158 = vpop.f32.mrf.mxu0
        %v1159 = vadd.f32 %v1091, %v1158
        %1160 = vmatmul.f32.gmra.mxu0 %v407
        %v1161 = vpop.f32.mrf.mxu0
        %v1162 = vadd.f32 %v1094, %v1161
        %1163 = vmatmul.f32.gmra.mxu0 %v423
        %v1164 = vpop.f32.mrf.mxu0
        %v1165 = vadd.f32 %v1097, %v1164
        %1166 = vmatmul.f32.gmra.mxu0 %v439
        %v1167 = vpop.f32.mrf.mxu0
        %v1168 = vadd.f32 %v1100, %v1167
        %1169 = vmatmul.f32.gmra.mxu0 %v455
        %v1170 = vpop.f32.mrf.mxu0
        %v1171 = vadd.f32 %v1103, %v1170
        %1172 = vmatmul.f32.gmra.mxu0 %v471
        %v1173 = vpop.f32.mrf.mxu0
        %v1174 = vadd.f32 %v1106, %v1173
        %1175 = vmatmul.f32.gmra.mxu0 %v487
        %v1176 = vpop.f32.mrf.mxu0
        %v1177 = vadd.f32 %v1109, %v1176
        %1178 = vmatmul.f32.gmra.mxu0 %v503
        %v1179 = vpop.f32.mrf.mxu0
        %v1180 = vadd.f32 %v1112, %v1179
        %1181 = vdwg.mxu0
        %1182 = vmatpush.msra.mxu0 %v625
        %1183 = vmatpush.msra.mxu0 %v624
        %1184 = vmatpush.msra.mxu0 %v623
        %1185 = vmatpush.msra.mxu0 %v622
        %1186 = vmatpush.msra.mxu0 %v621
        %1187 = vmatpush.msra.mxu0 %v620
        %1188 = vmatpush.msra.mxu0 %v619
        %1189 = vmatpush.msra.mxu0 %v618
        %1190 = vmatpush.msra.mxu0 %v617
        %1191 = vmatpush.msra.mxu0 %v616
        %1192 = vmatpush.msra.mxu0 %v615
        %1193 = vmatpush.msra.mxu0 %v614
        %1194 = vmatpush.msra.mxu0 %v613
        %1195 = vmatpush.msra.mxu0 %v612
        %1196 = vmatpush.msra.mxu0 %v611
        %1197 = vmatpush.msra.mxu0 %v610
        %1198 = vmatmul.f32.gmra.mxu0 %v248
        %v1199 = vpop.f32.mrf.mxu0
        %v1200 = vadd.f32 %v1132, %v1199
        %1201 = vmatmul.f32.gmra.mxu0 %v264
        %v1202 = vpop.f32.mrf.mxu0
        %v1203 = vadd.f32 %v1135, %v1202
        %1204 = vmatmul.f32.gmra.mxu0 %v280
        %v1205 = vpop.f32.mrf.mxu0
        %v1206 = vadd.f32 %v1138, %v1205
        %1207 = vmatmul.f32.gmra.mxu0 %v296
        %v1208 = vpop.f32.mrf.mxu0
        %v1209 = vadd.f32 %v1141, %v1208
        %1210 = vmatmul.f32.gmra.mxu0 %v312
        %v1211 = vpop.f32.mrf.mxu0
        %v1212 = vadd.f32 %v1144, %v1211
        %1213 = vmatmul.f32.gmra.mxu0 %v328
        %v1214 = vpop.f32.mrf.mxu0
        %v1215 = vadd.f32 %v1147, %v1214
        %1216 = vmatmul.f32.gmra.mxu0 %v344
        %v1217 = vpop.f32.mrf.mxu0
        %v1218 = vadd.f32 %v1150, %v1217
        %1219 = vmatmul.f32.gmra.mxu0 %v360
        %v1220 = vpop.f32.mrf.mxu0
        %v1221 = vadd.f32 %v1153, %v1220
        %1222 = vmatmul.f32.gmra.mxu0 %v376
        %v1223 = vpop.f32.mrf.mxu0
        %v1224 = vadd.f32 %v1156, %v1223
        %1225 = vmatmul.f32.gmra.mxu0 %v392
        %v1226 = vpop.f32.mrf.mxu0
        %v1227 = vadd.f32 %v1159, %v1226
        %1228 = vmatmul.f32.gmra.mxu0 %v408
        %v1229 = vpop.f32.mrf.mxu0
        %v1230 = vadd.f32 %v1162, %v1229
        %1231 = vmatmul.f32.gmra.mxu0 %v424
        %v1232 = vpop.f32.mrf.mxu0
        %v1233 = vadd.f32 %v1165, %v1232
        %1234 = vmatmul.f32.gmra.mxu0 %v440
        %v1235 = vpop.f32.mrf.mxu0
        %v1236 = vadd.f32 %v1168, %v1235
        %1237 = vmatmul.f32.gmra.mxu0 %v456
        %v1238 = vpop.f32.mrf.mxu0
        %v1239 = vadd.f32 %v1171, %v1238
        %1240 = vmatmul.f32.gmra.mxu0 %v472
        %v1241 = vpop.f32.mrf.mxu0
        %v1242 = vadd.f32 %v1174, %v1241
        %1243 = vmatmul.f32.gmra.mxu0 %v488
        %v1244 = vpop.f32.mrf.mxu0
        %v1245 = vadd.f32 %v1177, %v1244
        %1246 = vmatmul.f32.gmra.mxu0 %v504
        %v1247 = vpop.f32.mrf.mxu0
        %v1248 = vadd.f32 %v1180, %v1247
        %1249 = vdwg.mxu0
        %1250 = vmatpush.msra.mxu0 %v641
        %1251 = vmatpush.msra.mxu0 %v640
        %1252 = vmatpush.msra.mxu0 %v639
        %1253 = vmatpush.msra.mxu0 %v638
        %1254 = vmatpush.msra.mxu0 %v637
        %1255 = vmatpush.msra.mxu0 %v636
        %1256 = vmatpush.msra.mxu0 %v635
        %1257 = vmatpush.msra.mxu0 %v634
        %1258 = vmatpush.msra.mxu0 %v633
        %1259 = vmatpush.msra.mxu0 %v632
        %1260 = vmatpush.msra.mxu0 %v631
        %1261 = vmatpush.msra.mxu0 %v630
        %1262 = vmatpush.msra.mxu0 %v629
        %1263 = vmatpush.msra.mxu0 %v628
        %1264 = vmatpush.msra.mxu0 %v627
        %1265 = vmatpush.msra.mxu0 %v626
        %1266 = vmatmul.f32.gmra.mxu0 %v249
        %v1267 = vpop.f32.mrf.mxu0
        %v1268 = vadd.f32 %v1200, %v1267
        %1269 = vmatmul.f32.gmra.mxu0 %v265
        %v1270 = vpop.f32.mrf.mxu0
        %v1271 = vadd.f32 %v1203, %v1270
        %1272 = vmatmul.f32.gmra.mxu0 %v281
        %v1273 = vpop.f32.mrf.mxu0
        %v1274 = vadd.f32 %v1206, %v1273
        %1275 = vmatmul.f32.gmra.mxu0 %v297
        %v1276 = vpop.f32.mrf.mxu0
        %v1277 = vadd.f32 %v1209, %v1276
        %1278 = vmatmul.f32.gmra.mxu0 %v313
        %v1279 = vpop.f32.mrf.mxu0
        %v1280 = vadd.f32 %v1212, %v1279
        %1281 = vmatmul.f32.gmra.mxu0 %v329
        %v1282 = vpop.f32.mrf.mxu0
        %v1283 = vadd.f32 %v1215, %v1282
        %1284 = vmatmul.f32.gmra.mxu0 %v345
        %v1285 = vpop.f32.mrf.mxu0
        %v1286 = vadd.f32 %v1218, %v1285
        %1287 = vmatmul.f32.gmra.mxu0 %v361
        %v1288 = vpop.f32.mrf.mxu0
        %v1289 = vadd.f32 %v1221, %v1288
        %1290 = vmatmul.f32.gmra.mxu0 %v377
        %v1291 = vpop.f32.mrf.mxu0
        %v1292 = vadd.f32 %v1224, %v1291
        %1293 = vmatmul.f32.gmra.mxu0 %v393
        %v1294 = vpop.f32.mrf.mxu0
        %v1295 = vadd.f32 %v1227, %v1294
        %1296 = vmatmul.f32.gmra.mxu0 %v409
        %v1297 = vpop.f32.mrf.mxu0
        %v1298 = vadd.f32 %v1230, %v1297
        %1299 = vmatmul.f32.gmra.mxu0 %v425
        %v1300 = vpop.f32.mrf.mxu0
        %v1301 = vadd.f32 %v1233, %v1300
        %1302 = vmatmul.f32.gmra.mxu0 %v441
        %v1303 = vpop.f32.mrf.mxu0
        %v1304 = vadd.f32 %v1236, %v1303
        %1305 = vmatmul.f32.gmra.mxu0 %v457
        %v1306 = vpop.f32.mrf.mxu0
        %v1307 = vadd.f32 %v1239, %v1306
        %1308 = vmatmul.f32.gmra.mxu0 %v473
        %v1309 = vpop.f32.mrf.mxu0
        %v1310 = vadd.f32 %v1242, %v1309
        %1311 = vmatmul.f32.gmra.mxu0 %v489
        %v1312 = vpop.f32.mrf.mxu0
        %v1313 = vadd.f32 %v1245, %v1312
        %1314 = vmatmul.f32.gmra.mxu0 %v505
        %v1315 = vpop.f32.mrf.mxu0
        %v1316 = vadd.f32 %v1248, %v1315
        %1317 = vdwg.mxu0
        %1318 = vmatpush.msra.mxu0 %v657
        %1319 = vmatpush.msra.mxu0 %v656
        %1320 = vmatpush.msra.mxu0 %v655
        %1321 = vmatpush.msra.mxu0 %v654
        %1322 = vmatpush.msra.mxu0 %v653
        %1323 = vmatpush.msra.mxu0 %v652
        %1324 = vmatpush.msra.mxu0 %v651
        %1325 = vmatpush.msra.mxu0 %v650
        %1326 = vmatpush.msra.mxu0 %v649
        %1327 = vmatpush.msra.mxu0 %v648
        %1328 = vmatpush.msra.mxu0 %v647
        %1329 = vmatpush.msra.mxu0 %v646
        %1330 = vmatpush.msra.mxu0 %v645
        %1331 = vmatpush.msra.mxu0 %v644
        %1332 = vmatpush.msra.mxu0 %v643
        %1333 = vmatpush.msra.mxu0 %v642
        %1334 = vmatmul.f32.gmra.mxu0 %v250
        %v1335 = vpop.f32.mrf.mxu0
        %v1336 = vadd.f32 %v1268, %v1335
        %1337 = vmatmul.f32.gmra.mxu0 %v266
        %v1338 = vpop.f32.mrf.mxu0
        %v1339 = vadd.f32 %v1271, %v1338
        %1340 = vmatmul.f32.gmra.mxu0 %v282
        %v1341 = vpop.f32.mrf.mxu0
        %v1342 = vadd.f32 %v1274, %v1341
        %1343 = vmatmul.f32.gmra.mxu0 %v298
        %v1344 = vpop.f32.mrf.mxu0
        %v1345 = vadd.f32 %v1277, %v1344
        %1346 = vmatmul.f32.gmra.mxu0 %v314
        %v1347 = vpop.f32.mrf.mxu0
        %v1348 = vadd.f32 %v1280, %v1347
        %1349 = vmatmul.f32.gmra.mxu0 %v330
        %v1350 = vpop.f32.mrf.mxu0
        %v1351 = vadd.f32 %v1283, %v1350
        %1352 = vmatmul.f32.gmra.mxu0 %v346
        %v1353 = vpop.f32.mrf.mxu0
        %v1354 = vadd.f32 %v1286, %v1353
        %1355 = vmatmul.f32.gmra.mxu0 %v362
        %v1356 = vpop.f32.mrf.mxu0
        %v1357 = vadd.f32 %v1289, %v1356
        %1358 = vmatmul.f32.gmra.mxu0 %v378
        %v1359 = vpop.f32.mrf.mxu0
        %v1360 = vadd.f32 %v1292, %v1359
        %1361 = vmatmul.f32.gmra.mxu0 %v394
        %v1362 = vpop.f32.mrf.mxu0
        %v1363 = vadd.f32 %v1295, %v1362
        %1364 = vmatmul.f32.gmra.mxu0 %v410
        %v1365 = vpop.f32.mrf.mxu0
        %v1366 = vadd.f32 %v1298, %v1365
        %1367 = vmatmul.f32.gmra.mxu0 %v426
        %v1368 = vpop.f32.mrf.mxu0
        %v1369 = vadd.f32 %v1301, %v1368
        %1370 = vmatmul.f32.gmra.mxu0 %v442
        %v1371 = vpop.f32.mrf.mxu0
        %v1372 = vadd.f32 %v1304, %v1371
        %1373 = vmatmul.f32.gmra.mxu0 %v458
        %v1374 = vpop.f32.mrf.mxu0
        %v1375 = vadd.f32 %v1307, %v1374
        %1376 = vmatmul.f32.gmra.mxu0 %v474
        %v1377 = vpop.f32.mrf.mxu0
        %v1378 = vadd.f32 %v1310, %v1377
        %1379 = vmatmul.f32.gmra.mxu0 %v490
        %v1380 = vpop.f32.mrf.mxu0
        %v1381 = vadd.f32 %v1313, %v1380
        %1382 = vmatmul.f32.gmra.mxu0 %v506
        %v1383 = vpop.f32.mrf.mxu0
        %v1384 = vadd.f32 %v1316, %v1383
        %1385 = vdwg.mxu0
        %1386 = vmatpush.msra.mxu0 %v673
        %1387 = vmatpush.msra.mxu0 %v672
        %1388 = vmatpush.msra.mxu0 %v671
        %1389 = vmatpush.msra.mxu0 %v670
        %1390 = vmatpush.msra.mxu0 %v669
        %1391 = vmatpush.msra.mxu0 %v668
        %1392 = vmatpush.msra.mxu0 %v667
        %1393 = vmatpush.msra.mxu0 %v666
        %1394 = vmatpush.msra.mxu0 %v665
        %1395 = vmatpush.msra.mxu0 %v664
        %1396 = vmatpush.msra.mxu0 %v663
        %1397 = vmatpush.msra.mxu0 %v662
        %1398 = vmatpush.msra.mxu0 %v661
        %1399 = vmatpush.msra.mxu0 %v660
        %1400 = vmatpush.msra.mxu0 %v659
        %1401 = vmatpush.msra.mxu0 %v658
        %1402 = vmatmul.f32.gmra.mxu0 %v251
        %v1403 = vpop.f32.mrf.mxu0
        %v1404 = vadd.f32 %v1336, %v1403
        %1405 = vmatmul.f32.gmra.mxu0 %v267
        %v1406 = vpop.f32.mrf.mxu0
        %v1407 = vadd.f32 %v1339, %v1406
        %1408 = vmatmul.f32.gmra.mxu0 %v283
        %v1409 = vpop.f32.mrf.mxu0
        %v1410 = vadd.f32 %v1342, %v1409
        %1411 = vmatmul.f32.gmra.mxu0 %v299
        %v1412 = vpop.f32.mrf.mxu0
        %v1413 = vadd.f32 %v1345, %v1412
        %1414 = vmatmul.f32.gmra.mxu0 %v315
        %v1415 = vpop.f32.mrf.mxu0
        %v1416 = vadd.f32 %v1348, %v1415
        %1417 = vmatmul.f32.gmra.mxu0 %v331
        %v1418 = vpop.f32.mrf.mxu0
        %v1419 = vadd.f32 %v1351, %v1418
        %1420 = vmatmul.f32.gmra.mxu0 %v347
        %v1421 = vpop.f32.mrf.mxu0
        %v1422 = vadd.f32 %v1354, %v1421
        %1423 = vmatmul.f32.gmra.mxu0 %v363
        %v1424 = vpop.f32.mrf.mxu0
        %v1425 = vadd.f32 %v1357, %v1424
        %1426 = vmatmul.f32.gmra.mxu0 %v379
        %v1427 = vpop.f32.mrf.mxu0
        %v1428 = vadd.f32 %v1360, %v1427
        %1429 = vmatmul.f32.gmra.mxu0 %v395
        %v1430 = vpop.f32.mrf.mxu0
        %v1431 = vadd.f32 %v1363, %v1430
        %1432 = vmatmul.f32.gmra.mxu0 %v411
        %v1433 = vpop.f32.mrf.mxu0
        %v1434 = vadd.f32 %v1366, %v1433
        %1435 = vmatmul.f32.gmra.mxu0 %v427
        %v1436 = vpop.f32.mrf.mxu0
        %v1437 = vadd.f32 %v1369, %v1436
        %1438 = vmatmul.f32.gmra.mxu0 %v443
        %v1439 = vpop.f32.mrf.mxu0
        %v1440 = vadd.f32 %v1372, %v1439
        %1441 = vmatmul.f32.gmra.mxu0 %v459
        %v1442 = vpop.f32.mrf.mxu0
        %v1443 = vadd.f32 %v1375, %v1442
        %1444 = vmatmul.f32.gmra.mxu0 %v475
        %v1445 = vpop.f32.mrf.mxu0
        %v1446 = vadd.f32 %v1378, %v1445
        %1447 = vmatmul.f32.gmra.mxu0 %v491
        %v1448 = vpop.f32.mrf.mxu0
        %v1449 = vadd.f32 %v1381, %v1448
        %1450 = vmatmul.f32.gmra.mxu0 %v507
        %v1451 = vpop.f32.mrf.mxu0
        %v1452 = vadd.f32 %v1384, %v1451
        %1453 = vdwg.mxu0
        %1454 = vmatpush.msra.mxu0 %v689
        %1455 = vmatpush.msra.mxu0 %v688
        %1456 = vmatpush.msra.mxu0 %v687
        %1457 = vmatpush.msra.mxu0 %v686
        %1458 = vmatpush.msra.mxu0 %v685
        %1459 = vmatpush.msra.mxu0 %v684
        %1460 = vmatpush.msra.mxu0 %v683
        %1461 = vmatpush.msra.mxu0 %v682
        %1462 = vmatpush.msra.mxu0 %v681
        %1463 = vmatpush.msra.mxu0 %v680
        %1464 = vmatpush.msra.mxu0 %v679
        %1465 = vmatpush.msra.mxu0 %v678
        %1466 = vmatpush.msra.mxu0 %v677
        %1467 = vmatpush.msra.mxu0 %v676
        %1468 = vmatpush.msra.mxu0 %v675
        %1469 = vmatpush.msra.mxu0 %v674
        %1470 = vmatmul.f32.gmra.mxu0 %v252
        %v1471 = vpop.f32.mrf.mxu0
        %v1472 = vadd.f32 %v1404, %v1471
        %1473 = vmatmul.f32.gmra.mxu0 %v268
        %v1474 = vpop.f32.mrf.mxu0
        %v1475 = vadd.f32 %v1407, %v1474
        %1476 = vmatmul.f32.gmra.mxu0 %v284
        %v1477 = vpop.f32.mrf.mxu0
        %v1478 = vadd.f32 %v1410, %v1477
        %1479 = vmatmul.f32.gmra.mxu0 %v300
        %v1480 = vpop.f32.mrf.mxu0
        %v1481 = vadd.f32 %v1413, %v1480
        %1482 = vmatmul.f32.gmra.mxu0 %v316
        %v1483 = vpop.f32.mrf.mxu0
        %v1484 = vadd.f32 %v1416, %v1483
        %1485 = vmatmul.f32.gmra.mxu0 %v332
        %v1486 = vpop.f32.mrf.mxu0
        %v1487 = vadd.f32 %v1419, %v1486
        %1488 = vmatmul.f32.gmra.mxu0 %v348
        %v1489 = vpop.f32.mrf.mxu0
        %v1490 = vadd.f32 %v1422, %v1489
        %1491 = vmatmul.f32.gmra.mxu0 %v364
        %v1492 = vpop.f32.mrf.mxu0
        %v1493 = vadd.f32 %v1425, %v1492
        %1494 = vmatmul.f32.gmra.mxu0 %v380
        %v1495 = vpop.f32.mrf.mxu0
        %v1496 = vadd.f32 %v1428, %v1495
        %1497 = vmatmul.f32.gmra.mxu0 %v396
        %v1498 = vpop.f32.mrf.mxu0
        %v1499 = vadd.f32 %v1431, %v1498
        %1500 = vmatmul.f32.gmra.mxu0 %v412
        %v1501 = vpop.f32.mrf.mxu0
        %v1502 = vadd.f32 %v1434, %v1501
        %1503 = vmatmul.f32.gmra.mxu0 %v428
        %v1504 = vpop.f32.mrf.mxu0
        %v1505 = vadd.f32 %v1437, %v1504
        %1506 = vmatmul.f32.gmra.mxu0 %v444
        %v1507 = vpop.f32.mrf.mxu0
        %v1508 = vadd.f32 %v1440, %v1507
        %1509 = vmatmul.f32.gmra.mxu0 %v460
        %v1510 = vpop.f32.mrf.mxu0
        %v1511 = vadd.f32 %v1443, %v1510
        %1512 = vmatmul.f32.gmra.mxu0 %v476
        %v1513 = vpop.f32.mrf.mxu0
        %v1514 = vadd.f32 %v1446, %v1513
        %1515 = vmatmul.f32.gmra.mxu0 %v492
        %v1516 = vpop.f32.mrf.mxu0
        %v1517 = vadd.f32 %v1449, %v1516
        %1518 = vmatmul.f32.gmra.mxu0 %v508
        %v1519 = vpop.f32.mrf.mxu0
        %v1520 = vadd.f32 %v1452, %v1519
        %1521 = vdwg.mxu0
        %1522 = vmatpush.msra.mxu0 %v705
        %1523 = vmatpush.msra.mxu0 %v704
        %1524 = vmatpush.msra.mxu0 %v703
        %1525 = vmatpush.msra.mxu0 %v702
        %1526 = vmatpush.msra.mxu0 %v701
        %1527 = vmatpush.msra.mxu0 %v700
        %1528 = vmatpush.msra.mxu0 %v699
        %1529 = vmatpush.msra.mxu0 %v698
        %1530 = vmatpush.msra.mxu0 %v697
        %1531 = vmatpush.msra.mxu0 %v696
        %1532 = vmatpush.msra.mxu0 %v695
        %1533 = vmatpush.msra.mxu0 %v694
        %1534 = vmatpush.msra.mxu0 %v693
        %1535 = vmatpush.msra.mxu0 %v692
        %1536 = vmatpush.msra.mxu0 %v691
        %1537 = vmatpush.msra.mxu0 %v690
        %1538 = vmatmul.f32.gmra.mxu0 %v253
        %v1539 = vpop.f32.mrf.mxu0
        %v1540 = vadd.f32 %v1472, %v1539
        %1541 = vmatmul.f32.gmra.mxu0 %v269
        %v1542 = vpop.f32.mrf.mxu0
        %v1543 = vadd.f32 %v1475, %v1542
        %1544 = vmatmul.f32.gmra.mxu0 %v285
        %v1545 = vpop.f32.mrf.mxu0
        %v1546 = vadd.f32 %v1478, %v1545
        %1547 = vmatmul.f32.gmra.mxu0 %v301
        %v1548 = vpop.f32.mrf.mxu0
        %v1549 = vadd.f32 %v1481, %v1548
        %1550 = vmatmul.f32.gmra.mxu0 %v317
        %v1551 = vpop.f32.mrf.mxu0
        %v1552 = vadd.f32 %v1484, %v1551
        %1553 = vmatmul.f32.gmra.mxu0 %v333
        %v1554 = vpop.f32.mrf.mxu0
        %v1555 = vadd.f32 %v1487, %v1554
        %1556 = vmatmul.f32.gmra.mxu0 %v349
        %v1557 = vpop.f32.mrf.mxu0
        %v1558 = vadd.f32 %v1490, %v1557
        %1559 = vmatmul.f32.gmra.mxu0 %v365
        %v1560 = vpop.f32.mrf.mxu0
        %v1561 = vadd.f32 %v1493, %v1560
        %1562 = vmatmul.f32.gmra.mxu0 %v381
        %v1563 = vpop.f32.mrf.mxu0
        %v1564 = vadd.f32 %v1496, %v1563
        %1565 = vmatmul.f32.gmra.mxu0 %v397
        %v1566 = vpop.f32.mrf.mxu0
        %v1567 = vadd.f32 %v1499, %v1566
        %1568 = vmatmul.f32.gmra.mxu0 %v413
        %v1569 = vpop.f32.mrf.mxu0
        %v1570 = vadd.f32 %v1502, %v1569
        %1571 = vmatmul.f32.gmra.mxu0 %v429
        %v1572 = vpop.f32.mrf.mxu0
        %v1573 = vadd.f32 %v1505, %v1572
        %1574 = vmatmul.f32.gmra.mxu0 %v445
        %v1575 = vpop.f32.mrf.mxu0
        %v1576 = vadd.f32 %v1508, %v1575
        %1577 = vmatmul.f32.gmra.mxu0 %v461
        %v1578 = vpop.f32.mrf.mxu0
        %v1579 = vadd.f32 %v1511, %v1578
        %1580 = vmatmul.f32.gmra.mxu0 %v477
        %v1581 = vpop.f32.mrf.mxu0
        %v1582 = vadd.f32 %v1514, %v1581
        %1583 = vmatmul.f32.gmra.mxu0 %v493
        %v1584 = vpop.f32.mrf.mxu0
        %v1585 = vadd.f32 %v1517, %v1584
        %1586 = vmatmul.f32.gmra.mxu0 %v509
        %v1587 = vpop.f32.mrf.mxu0
        %v1588 = vadd.f32 %v1520, %v1587
        %1589 = vdwg.mxu0
        %1590 = vmatpush.msra.mxu0 %v721
        %1591 = vmatpush.msra.mxu0 %v720
        %1592 = vmatpush.msra.mxu0 %v719
        %1593 = vmatpush.msra.mxu0 %v718
        %1594 = vmatpush.msra.mxu0 %v717
        %1595 = vmatpush.msra.mxu0 %v716
        %1596 = vmatpush.msra.mxu0 %v715
        %1597 = vmatpush.msra.mxu0 %v714
        %1598 = vmatpush.msra.mxu0 %v713
        %1599 = vmatpush.msra.mxu0 %v712
        %1600 = vmatpush.msra.mxu0 %v711
        %1601 = vmatpush.msra.mxu0 %v710
        %1602 = vmatpush.msra.mxu0 %v709
        %1603 = vmatpush.msra.mxu0 %v708
        %1604 = vmatpush.msra.mxu0 %v707
        %1605 = vmatpush.msra.mxu0 %v706
        %1606 = vmatmul.f32.gmra.mxu0 %v254
        %v1607 = vpop.f32.mrf.mxu0
        %v1608 = vadd.f32 %v1540, %v1607
        %1609 = vmatmul.f32.gmra.mxu0 %v270
        %v1610 = vpop.f32.mrf.mxu0
        %v1611 = vadd.f32 %v1543, %v1610
        %1612 = vmatmul.f32.gmra.mxu0 %v286
        %v1613 = vpop.f32.mrf.mxu0
        %v1614 = vadd.f32 %v1546, %v1613
        %1615 = vmatmul.f32.gmra.mxu0 %v302
        %v1616 = vpop.f32.mrf.mxu0
        %v1617 = vadd.f32 %v1549, %v1616
        %1618 = vmatmul.f32.gmra.mxu0 %v318
        %v1619 = vpop.f32.mrf.mxu0
        %v1620 = vadd.f32 %v1552, %v1619
        %1621 = vmatmul.f32.gmra.mxu0 %v334
        %v1622 = vpop.f32.mrf.mxu0
        %v1623 = vadd.f32 %v1555, %v1622
        %1624 = vmatmul.f32.gmra.mxu0 %v350
        %v1625 = vpop.f32.mrf.mxu0
        %v1626 = vadd.f32 %v1558, %v1625
        %1627 = vmatmul.f32.gmra.mxu0 %v366
        %v1628 = vpop.f32.mrf.mxu0
        %v1629 = vadd.f32 %v1561, %v1628
        %1630 = vmatmul.f32.gmra.mxu0 %v382
        %v1631 = vpop.f32.mrf.mxu0
        %v1632 = vadd.f32 %v1564, %v1631
        %1633 = vmatmul.f32.gmra.mxu0 %v398
        %v1634 = vpop.f32.mrf.mxu0
        %v1635 = vadd.f32 %v1567, %v1634
        %1636 = vmatmul.f32.gmra.mxu0 %v414
        %v1637 = vpop.f32.mrf.mxu0
        %v1638 = vadd.f32 %v1570, %v1637
        %1639 = vmatmul.f32.gmra.mxu0 %v430
        %v1640 = vpop.f32.mrf.mxu0
        %v1641 = vadd.f32 %v1573, %v1640
        %1642 = vmatmul.f32.gmra.mxu0 %v446
        %v1643 = vpop.f32.mrf.mxu0
        %v1644 = vadd.f32 %v1576, %v1643
        %1645 = vmatmul.f32.gmra.mxu0 %v462
        %v1646 = vpop.f32.mrf.mxu0
        %v1647 = vadd.f32 %v1579, %v1646
        %1648 = vmatmul.f32.gmra.mxu0 %v478
        %v1649 = vpop.f32.mrf.mxu0
        %v1650 = vadd.f32 %v1582, %v1649
        %1651 = vmatmul.f32.gmra.mxu0 %v494
        %v1652 = vpop.f32.mrf.mxu0
        %v1653 = vadd.f32 %v1585, %v1652
        %1654 = vmatmul.f32.gmra.mxu0 %v510
        %v1655 = vpop.f32.mrf.mxu0
        %v1656 = vadd.f32 %v1588, %v1655
        %1657 = vdwg.mxu0
        %1658 = vmatpush.msra.mxu0 %v737
        %1659 = vmatpush.msra.mxu0 %v736
        %1660 = vmatpush.msra.mxu0 %v735
        %1661 = vmatpush.msra.mxu0 %v734
        %1662 = vmatpush.msra.mxu0 %v733
        %1663 = vmatpush.msra.mxu0 %v732
        %1664 = vmatpush.msra.mxu0 %v731
        %1665 = vmatpush.msra.mxu0 %v730
        %1666 = vmatpush.msra.mxu0 %v729
        %1667 = vmatpush.msra.mxu0 %v728
        %1668 = vmatpush.msra.mxu0 %v727
        %1669 = vmatpush.msra.mxu0 %v726
        %1670 = vmatpush.msra.mxu0 %v725
        %1671 = vmatpush.msra.mxu0 %v724
        %1672 = vmatpush.msra.mxu0 %v723
        %1673 = vmatpush.msra.mxu0 %v722
        %1674 = vmatmul.f32.gmra.mxu0 %v255
        %v1675 = vpop.f32.mrf.mxu0
        %v1676 = vadd.f32 %v1608, %v1675
        %1677 = vmatmul.f32.gmra.mxu0 %v271
        %v1678 = vpop.f32.mrf.mxu0
        %v1679 = vadd.f32 %v1611, %v1678
        %1680 = vmatmul.f32.gmra.mxu0 %v287
        %v1681 = vpop.f32.mrf.mxu0
        %v1682 = vadd.f32 %v1614, %v1681
        %1683 = vmatmul.f32.gmra.mxu0 %v303
        %v1684 = vpop.f32.mrf.mxu0
        %v1685 = vadd.f32 %v1617, %v1684
        %1686 = vmatmul.f32.gmra.mxu0 %v319
        %v1687 = vpop.f32.mrf.mxu0
        %v1688 = vadd.f32 %v1620, %v1687
        %1689 = vmatmul.f32.gmra.mxu0 %v335
        %v1690 = vpop.f32.mrf.mxu0
        %v1691 = vadd.f32 %v1623, %v1690
        %1692 = vmatmul.f32.gmra.mxu0 %v351
        %v1693 = vpop.f32.mrf.mxu0
        %v1694 = vadd.f32 %v1626, %v1693
        %1695 = vmatmul.f32.gmra.mxu0 %v367
        %v1696 = vpop.f32.mrf.mxu0
        %v1697 = vadd.f32 %v1629, %v1696
        %1698 = vmatmul.f32.gmra.mxu0 %v383
        %v1699 = vpop.f32.mrf.mxu0
        %v1700 = vadd.f32 %v1632, %v1699
        %1701 = vmatmul.f32.gmra.mxu0 %v399
        %v1702 = vpop.f32.mrf.mxu0
        %v1703 = vadd.f32 %v1635, %v1702
        %1704 = vmatmul.f32.gmra.mxu0 %v415
        %v1705 = vpop.f32.mrf.mxu0
        %v1706 = vadd.f32 %v1638, %v1705
        %1707 = vmatmul.f32.gmra.mxu0 %v431
        %v1708 = vpop.f32.mrf.mxu0
        %v1709 = vadd.f32 %v1641, %v1708
        %1710 = vmatmul.f32.gmra.mxu0 %v447
        %v1711 = vpop.f32.mrf.mxu0
        %v1712 = vadd.f32 %v1644, %v1711
        %1713 = vmatmul.f32.gmra.mxu0 %v463
        %v1714 = vpop.f32.mrf.mxu0
        %v1715 = vadd.f32 %v1647, %v1714
        %1716 = vmatmul.f32.gmra.mxu0 %v479
        %v1717 = vpop.f32.mrf.mxu0
        %v1718 = vadd.f32 %v1650, %v1717
        %1719 = vmatmul.f32.gmra.mxu0 %v495
        %v1720 = vpop.f32.mrf.mxu0
        %v1721 = vadd.f32 %v1653, %v1720
        %1722 = vmatmul.f32.gmra.mxu0 %v511
        %v1723 = vpop.f32.mrf.mxu0
        %v1724 = vadd.f32 %v1656, %v1723
        %1725 = vdwg.mxu0
        %1726 = vmatpush.msra.mxu0 %v753
        %1727 = vmatpush.msra.mxu0 %v752
        %1728 = vmatpush.msra.mxu0 %v751
        %1729 = vmatpush.msra.mxu0 %v750
        %1730 = vmatpush.msra.mxu0 %v749
        %1731 = vmatpush.msra.mxu0 %v748
        %1732 = vmatpush.msra.mxu0 %v747
        %1733 = vmatpush.msra.mxu0 %v746
        %1734 = vmatpush.msra.mxu0 %v745
        %1735 = vmatpush.msra.mxu0 %v744
        %1736 = vmatpush.msra.mxu0 %v743
        %1737 = vmatpush.msra.mxu0 %v742
        %1738 = vmatpush.msra.mxu0 %v741
        %1739 = vmatpush.msra.mxu0 %v740
        %1740 = vmatpush.msra.mxu0 %v739
        %1741 = vmatpush.msra.mxu0 %v738
        %1742 = vmatmul.f32.gmra.mxu0 %v256
        %v1743 = vpop.f32.mrf.mxu0
        %v1744 = vadd.f32 %v1676, %v1743
        %1745 = vmatmul.f32.gmra.mxu0 %v272
        %v1746 = vpop.f32.mrf.mxu0
        %v1747 = vadd.f32 %v1679, %v1746
        %1748 = vmatmul.f32.gmra.mxu0 %v288
        %v1749 = vpop.f32.mrf.mxu0
        %v1750 = vadd.f32 %v1682, %v1749
        %1751 = vmatmul.f32.gmra.mxu0 %v304
        %v1752 = vpop.f32.mrf.mxu0
        %v1753 = vadd.f32 %v1685, %v1752
        %1754 = vmatmul.f32.gmra.mxu0 %v320
        %v1755 = vpop.f32.mrf.mxu0
        %v1756 = vadd.f32 %v1688, %v1755
        %1757 = vmatmul.f32.gmra.mxu0 %v336
        %v1758 = vpop.f32.mrf.mxu0
        %v1759 = vadd.f32 %v1691, %v1758
        %1760 = vmatmul.f32.gmra.mxu0 %v352
        %v1761 = vpop.f32.mrf.mxu0
        %v1762 = vadd.f32 %v1694, %v1761
        %1763 = vmatmul.f32.gmra.mxu0 %v368
        %v1764 = vpop.f32.mrf.mxu0
        %v1765 = vadd.f32 %v1697, %v1764
        %1766 = vmatmul.f32.gmra.mxu0 %v384
        %v1767 = vpop.f32.mrf.mxu0
        %v1768 = vadd.f32 %v1700, %v1767
        %1769 = vmatmul.f32.gmra.mxu0 %v400
        %v1770 = vpop.f32.mrf.mxu0
        %v1771 = vadd.f32 %v1703, %v1770
        %1772 = vmatmul.f32.gmra.mxu0 %v416
        %v1773 = vpop.f32.mrf.mxu0
        %v1774 = vadd.f32 %v1706, %v1773
        %1775 = vmatmul.f32.gmra.mxu0 %v432
        %v1776 = vpop.f32.mrf.mxu0
        %v1777 = vadd.f32 %v1709, %v1776
        %1778 = vmatmul.f32.gmra.mxu0 %v448
        %v1779 = vpop.f32.mrf.mxu0
        %v1780 = vadd.f32 %v1712, %v1779
        %1781 = vmatmul.f32.gmra.mxu0 %v464
        %v1782 = vpop.f32.mrf.mxu0
        %v1783 = vadd.f32 %v1715, %v1782
        %1784 = vmatmul.f32.gmra.mxu0 %v480
        %v1785 = vpop.f32.mrf.mxu0
        %v1786 = vadd.f32 %v1718, %v1785
        %1787 = vmatmul.f32.gmra.mxu0 %v496
        %v1788 = vpop.f32.mrf.mxu0
        %v1789 = vadd.f32 %v1721, %v1788
        %1790 = vmatmul.f32.gmra.mxu0 %v512
        %v1791 = vpop.f32.mrf.mxu0
        %v1792 = vadd.f32 %v1724, %v1791
        %1793 = vdwg.mxu0
        %1794 = vmatpush.msra.mxu0 %v769
        %1795 = vmatpush.msra.mxu0 %v768
        %1796 = vmatpush.msra.mxu0 %v767
        %1797 = vmatpush.msra.mxu0 %v766
        %1798 = vmatpush.msra.mxu0 %v765
        %1799 = vmatpush.msra.mxu0 %v764
        %1800 = vmatpush.msra.mxu0 %v763
        %1801 = vmatpush.msra.mxu0 %v762
        %1802 = vmatpush.msra.mxu0 %v761
        %1803 = vmatpush.msra.mxu0 %v760
        %1804 = vmatpush.msra.mxu0 %v759
        %1805 = vmatpush.msra.mxu0 %v758
        %1806 = vmatpush.msra.mxu0 %v757
        %1807 = vmatpush.msra.mxu0 %v756
        %1808 = vmatpush.msra.mxu0 %v755
        %1809 = vmatpush.msra.mxu0 %v754
        %1810 = vmatmul.f32.gmra.mxu0 %v257
        %v1811 = vpop.f32.mrf.mxu0
        %v1812 = vadd.f32 %v1744, %v1811
        %1813 = vmatmul.f32.gmra.mxu0 %v273
        %v1814 = vpop.f32.mrf.mxu0
        %v1815 = vadd.f32 %v1747, %v1814
        %1816 = vmatmul.f32.gmra.mxu0 %v289
        %v1817 = vpop.f32.mrf.mxu0
        %v1818 = vadd.f32 %v1750, %v1817
        %1819 = vmatmul.f32.gmra.mxu0 %v305
        %v1820 = vpop.f32.mrf.mxu0
        %v1821 = vadd.f32 %v1753, %v1820
        %1822 = vmatmul.f32.gmra.mxu0 %v321
        %v1823 = vpop.f32.mrf.mxu0
        %v1824 = vadd.f32 %v1756, %v1823
        %1825 = vmatmul.f32.gmra.mxu0 %v337
        %v1826 = vpop.f32.mrf.mxu0
        %v1827 = vadd.f32 %v1759, %v1826
        %1828 = vmatmul.f32.gmra.mxu0 %v353
        %v1829 = vpop.f32.mrf.mxu0
        %v1830 = vadd.f32 %v1762, %v1829
        %1831 = vmatmul.f32.gmra.mxu0 %v369
        %v1832 = vpop.f32.mrf.mxu0
        %v1833 = vadd.f32 %v1765, %v1832
        %1834 = vmatmul.f32.gmra.mxu0 %v385
        %v1835 = vpop.f32.mrf.mxu0
        %v1836 = vadd.f32 %v1768, %v1835
        %1837 = vmatmul.f32.gmra.mxu0 %v401
        %v1838 = vpop.f32.mrf.mxu0
        %v1839 = vadd.f32 %v1771, %v1838
        %1840 = vmatmul.f32.gmra.mxu0 %v417
        %v1841 = vpop.f32.mrf.mxu0
        %v1842 = vadd.f32 %v1774, %v1841
        %1843 = vmatmul.f32.gmra.mxu0 %v433
        %v1844 = vpop.f32.mrf.mxu0
        %v1845 = vadd.f32 %v1777, %v1844
        %1846 = vmatmul.f32.gmra.mxu0 %v449
        %v1847 = vpop.f32.mrf.mxu0
        %v1848 = vadd.f32 %v1780, %v1847
        %1849 = vmatmul.f32.gmra.mxu0 %v465
        %v1850 = vpop.f32.mrf.mxu0
        %v1851 = vadd.f32 %v1783, %v1850
        %1852 = vmatmul.f32.gmra.mxu0 %v481
        %v1853 = vpop.f32.mrf.mxu0
        %v1854 = vadd.f32 %v1786, %v1853
        %1855 = vmatmul.f32.gmra.mxu0 %v497
        %v1856 = vpop.f32.mrf.mxu0
        %v1857 = vadd.f32 %v1789, %v1856
        %1858 = vmatmul.f32.gmra.mxu0 %v513
        %v1859 = vpop.f32.mrf.mxu0
        %v1860 = vadd.f32 %v1792, %v1859
        %1861 = vdwg.mxu0
        %v1862 = vtanh.pop %v1812
        %v1863 = vtanh.pop %v1815
        %v1864 = vtanh.pop %v1818
        %v1865 = vtanh.pop %v1821
        %v1866 = vtanh.pop %v1824
        %v1867 = vtanh.pop %v1827
        %v1868 = vtanh.pop %v1830
        %v1869 = vtanh.pop %v1833
        %v1870 = vtanh.pop %v1836
        %v1871 = vtanh.pop %v1839
        %v1872 = vtanh.pop %v1842
        %v1873 = vtanh.pop %v1845
        %v1874 = vtanh.pop %v1848
        %v1875 = vtanh.pop %v1851
        %v1876 = vtanh.pop %v1854
        %v1877 = vtanh.pop %v1857
        %v1878 = vtanh.pop %v1860
        %1879 = vst [vmem:[%s230] sm:$0xff] %v1862
        %1880 = vst [vmem:[%s230 + $0x8] sm:$0xff] %v1863
        %1881 = vst [vmem:[%s230 + $0x10] sm:$0xff] %v1864
        %1882 = vst [vmem:[%s230 + $0x18] sm:$0xff] %v1865
        %1883 = vst [vmem:[%s230 + $0x20] sm:$0xff] %v1866
        %1884 = vst [vmem:[%s230 + $0x28] sm:$0xff] %v1867
        %1885 = vst [vmem:[%s230 + $0x30] sm:$0xff] %v1868
        %1886 = vst [vmem:[%s230 + $0x38] sm:$0xff] %v1869
        %1887 = vst [vmem:[%s230 + $0x40] sm:$0xff] %v1870
        %1888 = vst [vmem:[%s230 + $0x48] sm:$0xff] %v1871
        %1889 = vst [vmem:[%s230 + $0x50] sm:$0xff] %v1872
        %1890 = vst [vmem:[%s230 + $0x58] sm:$0xff] %v1873
        %1891 = vst [vmem:[%s230 + $0x60] sm:$0xff] %v1874
        %1892 = vst [vmem:[%s230 + $0x68] sm:$0xff] %v1875
        %1893 = vst [vmem:[%s230 + $0x70] sm:$0xff] %v1876
        %1894 = vst [vmem:[%s230 + $0x78] sm:$0xff] %v1877
        %1895 = vst [vmem:[%s230 + $0x80] sm:$0xff] %v1878
        %s1896 = sand.u32 %s97, 1
        %s1897 = scalar_lea.sflag [#allocation4], %s1896
        %s1898 = sand.u32 %s97, 1
        %s1899 = smul.addr %s1898, 136
        %s1900 = scalar_lea.vmem [#allocation8], %s1899
        // Predicated region
        $region45: #{tpu_custom_call.1} parent=31 // pred_check
          %p1901 = pneg %p107
        $region46: #{tpu_custom_call.1} parent=31 // pred_check_branch
          %1903 = sbr.rel (%p1901) target = $region48
        $region47: #{tpu_custom_call.1} parent=31 // pred_region
          %s1904 = smul.u32 17, %s21
          %s1905 = ssub.s32 33, %s1904
          %p1906 = scmp.lt.s32.totalorder %s1905, 17
          %s1907 = scalar_select %p1906, %s1905, 17
          %s1908 = smul.u32 8, %s1907
          %s1909 = ssub.s32 136, %s1908
          %s1910 = sshll.u32 %s1909, 4
          %1911 = vsyncadd %s1897, %s1910
          %p1912 = scmp.ne.s32.totalorder 0, %s1908
          %s1913 = smul.addr %s1904, 8
          %s1914 = scalar_lea.hbm %s3, %s1913
          %s1915 = smul.u32 8, %s1907
          %s1916 = sshll.u32 %s1900, 4
          %s1917 = int_to_ptr.vmem [resolvable:$true] %s1916
          %s1918 = sshll.u32 %s1914, 4
          %s1919 = int_to_ptr.hbm [resolvable:$true] %s1918
          %s1920 = sshll.u32 %s1915, 4
          %1924 = dma.vmem_to_hbm [thread:$0]  (%p1912), %s1917, %s1920, %s1919, %s1897, 128, 128, 8
        $region48: #{tpu_custom_call.1} parent=31 // pred_fallthru
          _
      $region32: #{tpu_custom_call.1} parent=5 // pred_fallthru
        _
      %p1925 = scmp.le.s32.totalorder 2, %s16
      // Predicated region
      $region49: #{tpu_custom_call.1} parent=5 // pred_check
        %p1926 = pneg %p1925
      $region50: #{tpu_custom_call.1} parent=5 // pred_check_branch
        %1928 = sbr.rel (%p1926) target = $region52
      $region51: #{tpu_custom_call.1} parent=5 // pred_region
        %s1929 = ssub.s32 %s16, 2
        // Predicated region
        $region53: #{tpu_custom_call.1} parent=51 // pred_check
          %p1930 = pneg %p113
        $region54: #{tpu_custom_call.1} parent=51 // pred_check_branch
          %1932 = sbr.rel (%p1930) target = $region56
        $region55: #{tpu_custom_call.1} parent=51 // pred_region
          %s1933 = sand.u32 %s98, 1
          %s1934 = scalar_lea.sflag [#allocation4], %s1933
          %s1935 = sand.u32 %s98, 1
          %s1936 = smul.addr %s1935, 136
          %s1937 = scalar_lea.vmem [#allocation8], %s1936
          %1939 = dma.done %s1934, 2176
        $region56: #{tpu_custom_call.1} parent=51 // pred_fallthru
          _
      $region52: #{tpu_custom_call.1} parent=5 // pred_fallthru
        _
    $region6: #{tpu_custom_call.1} parent=1 // loop_footer
      %s20 = sadd.s32 1, %s16
    $region7: #{tpu_custom_call.1} parent=1 // loop_footer_branch
      %15 = sbr.rel target = $region3
    $region8: #{tpu_custom_call.1} parent=1 // loop_exit
      _
    %1940 = vsyncpa [#allocation3], 1
    %s1941 = scalar_lea.sflag [#allocation3], 1
    %1942 = vsyncpa %s1941, 1
    %1943 = vsyncpa [#allocation6], 1
    %1944 = vsyncpa [#allocation4], 1
    %s1945 = scalar_lea.sflag [#allocation4], 1
    %1946 = vsyncpa %s1945, 1

</llo_original>
